<compile_context>
chip_gen: v7x
topology: tpu7x:2x2x1
jax: 0.10.0
libtpu: 0.0.40
codegen_flags: <defaults>
</compile_context>

<pallas_src>
import functools

import jax
import jax.numpy as jnp
from jax import lax
from jax.experimental import pallas as pl
from jax.experimental.pallas import tpu as pltpu


def _spatial_attention_kernel(x_ref, w1_ref, b1_ref, w2f_ref, b2_ref,
                              w3f_ref, b3_ref, w4_ref, b4_ref, mask_ref,
                              out_ref, *, RC, W, D, BHW):
    prec = lax.Precision.HIGHEST

    x = x_ref[...]                       # (C, B*HW) f32, lane-dense
    masks = mask_ref[...]                # (9, B*HW) f32 border masks

    # ---- conv1: 1x1 (C -> RC) as one MXU matmul + bias + ReLU ------------
    y = jnp.dot(w1_ref[...], x, preferred_element_type=jnp.float32,
                precision=prec)
    y = jnp.maximum(y + b1_ref[...], 0.0)          # (RC, B*HW)

    # ---- dilated 3x3 conv (RC -> RC), padding = dilation, + ReLU ---------
    # All 9 taps are built as lane rolls (XLU) * precomputed border mask
    # (one vmul each), stacked along sublanes, then mixed with a SINGLE MXU
    # matmul of shape (RC, 9*RC) x (9*RC, B*HW).
    def dilated3x3_relu(y_in, wf_ref, b_ref):
        taps = []
        for kh in range(3):
            for kw in range(3):
                t = kh * 3 + kw
                dh = (kh - 1) * D
                dw = (kw - 1) * D
                if dh == 0 and dw == 0:
                    taps.append(y_in)
                else:
                    off = dh * W + dw
                    shifted = pltpu.roll(y_in, shift=(-off) % BHW, axis=1)
                    taps.append(shifted * masks[t:t + 1, :])
        stacked = jnp.concatenate(taps, axis=0)     # (9*RC, B*HW)
        z = jnp.dot(wf_ref[...], stacked, preferred_element_type=jnp.float32,
                    precision=prec)
        return jnp.maximum(z + b_ref[...], 0.0)

    y = dilated3x3_relu(y, w2f_ref, b2_ref)
    y = dilated3x3_relu(y, w3f_ref, b3_ref)

    # ---- conv4: 1x1 (RC -> 1) as one MXU matmul, no ReLU -----------------
    out = jnp.dot(w4_ref[...], y, preferred_element_type=jnp.float32,
                  precision=prec)
    out_ref[...] = out + b4_ref[...]


def _choose_block_batch(N, C, HW):
    """Largest divisor B of N that keeps >=2 grid steps (when N>=2) and a
    conservative VMEM footprint for the double-buffered input block."""
    budget = 8 << 20                       # conservative (v7x scoped VMEM)
    per_img = C * HW * 4 * 4               # x block, 2 bufs + headroom
    b_max = max(1, budget // per_img)
    min_steps = 2 if N >= 2 else 1
    best = 1
    for b in range(1, N + 1):
        if N % b == 0 and b <= b_max and N // b >= min_steps:
            best = b
    return best


def spatial_attention(x, params, *, dilation=4):
    """x: (N, C, H, W) float32. params: (w1,b1,w2,b2,w3,b3,w4,b4) in
    PyTorch conv layout (OIHW weights, (O,) biases)."""
    N, C, H, W = x.shape
    w1, b1, w2, b2, w3, b3, w4, b4 = params
    RC = b1.shape[0]
    D = dilation
    HW = H * W

    B = _choose_block_batch(N, C, HW)      # images per grid step
    BHW = B * HW
    grid = N // B

    # Lane-dense layout: all images concatenated along lanes.
    x_flat = x.transpose(1, 0, 2, 3).reshape(C, N * HW)

    # MXU-friendly weight layouts (done once, outside the kernel).
    w1m = w1.reshape(RC, C)                                    # (RC, C)
    # Fused tap weights: w[o, t*RC + i] = w_conv[o, i, kh, kw], t = kh*3+kw.
    w2f = w2.transpose(0, 2, 3, 1).reshape(RC, 9 * RC)         # (RC, 9*RC)
    w3f = w3.transpose(0, 2, 3, 1).reshape(RC, 9 * RC)
    w4m = w4.reshape(1, RC)
    b1c = b1.reshape(RC, 1)
    b2c = b2.reshape(RC, 1)
    b3c = b3.reshape(RC, 1)
    b4c = b4.reshape(1, 1)

    # Precomputed border masks, shared by both dilated convs (same dilation).
    lane = jnp.arange(BHW, dtype=jnp.int32)
    hh = (lane // W) % H
    ww = lane % W
    mask_rows = []
    for kh in range(3):
        for kw in range(3):
            dh = (kh - 1) * D
            dw = (kw - 1) * D
            valid = ((hh + dh >= 0) & (hh + dh < H) &
                     (ww + dw >= 0) & (ww + dw < W))
            mask_rows.append(valid.astype(jnp.float32))
    mask_arr = jnp.stack(mask_rows, axis=0)                    # (9, BHW)

    kernel = functools.partial(_spatial_attention_kernel,
                               RC=RC, W=W, D=D, BHW=BHW)

    def full_spec(arr):
        nd = arr.ndim
        return pl.BlockSpec(arr.shape, lambda n, _nd=nd: (0,) * _nd)

    out = pl.pallas_call(
        kernel,
        out_shape=jax.ShapeDtypeStruct((1, N * HW), jnp.float32),
        grid_spec=pl.GridSpec(
            grid=(grid,),
            in_specs=[
                pl.BlockSpec((C, BHW), lambda n: (0, n)),
                full_spec(w1m), full_spec(b1c),
                full_spec(w2f), full_spec(b2c),
                full_spec(w3f), full_spec(b3c),
                full_spec(w4m), full_spec(b4c),
                full_spec(mask_arr),
            ],
            out_specs=pl.BlockSpec((1, BHW), lambda n: (0, n)),
        ),
        compiler_params=pltpu.CompilerParams(
            dimension_semantics=("parallel",)),
    )(x_flat, w1m, b1c, w2f, b2c, w3f, b3c, w4m, b4c, mask_arr)

    return out.reshape(1, N, H, W).transpose(1, 0, 2, 3)


def reference(x, params, *, dilation=4):
    """Pure-JAX reference (lax convs) mirroring the PyTorch module."""
    w1, b1, w2, b2, w3, b3, w4, b4 = params
    dn = ('NCHW', 'OIHW', 'NCHW')
    d = dilation
    prec = lax.Precision.HIGHEST
    y = lax.conv_general_dilated(x, w1, (1, 1), [(0, 0), (0, 0)],
                                 dimension_numbers=dn,
                                 precision=prec) + b1[None, :, None, None]
    y = jnp.maximum(y, 0.0)
    y = lax.conv_general_dilated(y, w2, (1, 1), [(d, d), (d, d)],
                                 rhs_dilation=(d, d), dimension_numbers=dn,
                                 precision=prec) + b2[None, :, None, None]
    y = jnp.maximum(y, 0.0)
    y = lax.conv_general_dilated(y, w3, (1, 1), [(d, d), (d, d)],
                                 rhs_dilation=(d, d), dimension_numbers=dn,
                                 precision=prec) + b3[None, :, None, None]
    y = jnp.maximum(y, 0.0)
    y = lax.conv_general_dilated(y, w4, (1, 1), [(0, 0), (0, 0)],
                                 dimension_numbers=dn,
                                 precision=prec) + b4[None, :, None, None]
    return y


if __name__ == "__main__":
    key = jax.random.PRNGKey(0)
    N, C, H, W = 2, 32, 16, 16          # num_channels=32 so C//16 = 2 > 0
    reduction_ratio, dilation = 16, 4
    RC = C // reduction_ratio

    ks = jax.random.split(key, 9)
    x = jax.random.normal(ks[0], (N, C, H, W), jnp.float32)
    w1 = jax.random.normal(ks[1], (RC, C, 1, 1), jnp.float32) * 0.1
    b1 = jax.random.normal(ks[2], (RC,), jnp.float32) * 0.1
    w2 = jax.random.normal(ks[3], (RC, RC, 3, 3), jnp.float32) * 0.1
    b2 = jax.random.normal(ks[4], (RC,), jnp.float32) * 0.1
    w3 = jax.random.normal(ks[5], (RC, RC, 3, 3), jnp.float32) * 0.1
    b3 = jax.random.normal(ks[6], (RC,), jnp.float32) * 0.1
    w4 = jax.random.normal(ks[7], (1, RC, 1, 1), jnp.float32) * 0.1
    b4 = jax.random.normal(ks[8], (1,), jnp.float32) * 0.1
    params = (w1, b1, w2, b2, w3, b3, w4, b4)

    out = spatial_attention(x, params, dilation=dilation)
    out = jax.block_until_ready(out)

    ref = reference(x, params, dilation=dilation)
    assert out.shape == (N, 1, H, W)
    max_err = float(jnp.max(jnp.abs(out - ref)))
    assert jnp.allclose(out, ref, atol=1e-4, rtol=1e-4), max_err

    print("KERNEL_OK")
</pallas_src>

<mosaic_0001>
module attributes {stable_mosaic.version = 11 : i64} {
  func.func @_spatial_attention_kernel(%arg0: i32, %arg1: memref<32x256xf32, #tpu.memory_space<vmem>>, %arg2: memref<2x32xf32, #tpu.memory_space<vmem>>, %arg3: memref<2x1xf32, #tpu.memory_space<vmem>>, %arg4: memref<2x18xf32, #tpu.memory_space<vmem>>, %arg5: memref<2x1xf32, #tpu.memory_space<vmem>>, %arg6: memref<2x18xf32, #tpu.memory_space<vmem>>, %arg7: memref<2x1xf32, #tpu.memory_space<vmem>>, %arg8: memref<1x2xf32, #tpu.memory_space<vmem>>, %arg9: memref<1x1xf32, #tpu.memory_space<vmem>>, %arg10: memref<9x256xf32, #tpu.memory_space<vmem>>, %arg11: memref<1x256xf32, #tpu.memory_space<vmem>>) attributes {dimension_semantics = [#tpu.dimension_semantics<parallel>], iteration_bounds = array<i64: 2>, scalar_prefetch = 0 : i64, scratch_operands = 0 : i64, tpu.core_type = #tpu.core_type<tc>, window_params = [{transform_indices = @transform_0, window_bounds = array<i64: 32, 256>}, {pipeline_mode = #tpu.pipeline_mode<synchronous>, transform_indices = @transform_1, window_bounds = array<i64: 2, 32>}, {pipeline_mode = #tpu.pipeline_mode<synchronous>, transform_indices = @transform_2, window_bounds = array<i64: 2, 1>}, {pipeline_mode = #tpu.pipeline_mode<synchronous>, transform_indices = @transform_3, window_bounds = array<i64: 2, 18>}, {pipeline_mode = #tpu.pipeline_mode<synchronous>, transform_indices = @transform_4, window_bounds = array<i64: 2, 1>}, {pipeline_mode = #tpu.pipeline_mode<synchronous>, transform_indices = @transform_5, window_bounds = array<i64: 2, 18>}, {pipeline_mode = #tpu.pipeline_mode<synchronous>, transform_indices = @transform_6, window_bounds = array<i64: 2, 1>}, {pipeline_mode = #tpu.pipeline_mode<synchronous>, transform_indices = @transform_7, window_bounds = array<i64: 1, 2>}, {pipeline_mode = #tpu.pipeline_mode<synchronous>, transform_indices = @transform_8, window_bounds = array<i64: 1, 1>}, {pipeline_mode = #tpu.pipeline_mode<synchronous>, transform_indices = @transform_9, window_bounds = array<i64: 9, 256>}, {transform_indices = @transform_10, window_bounds = array<i64: 1, 256>}]} {
    %c0 = arith.constant 0 : index
    %c0_0 = arith.constant 0 : index
    %0 = vector.load %arg1[%c0, %c0_0] : memref<32x256xf32, #tpu.memory_space<vmem>>, vector<32x256xf32>
    %c0_1 = arith.constant 0 : index
    %c0_2 = arith.constant 0 : index
    %1 = vector.load %arg10[%c0_1, %c0_2] : memref<9x256xf32, #tpu.memory_space<vmem>>, vector<9x256xf32>
    %c0_3 = arith.constant 0 : index
    %c0_4 = arith.constant 0 : index
    %2 = vector.load %arg2[%c0_3, %c0_4] : memref<2x32xf32, #tpu.memory_space<vmem>>, vector<2x32xf32>
    %cst = arith.constant dense<0.000000e+00> : vector<2x256xf32>
    %3 = tpu.matmul %2, %0, %cst {dimension_numbers = #tpu.dot_dimension_numbers<[1], [0], [0], [1], [0, 0, 1, 1], [], []>, precision = #tpu.contract_precision<fp32>} : vector<2x32xf32>, vector<32x256xf32>, vector<2x256xf32> -> vector<2x256xf32>
    %c0_5 = arith.constant 0 : index
    %c0_6 = arith.constant 0 : index
    %4 = vector.load %arg3[%c0_5, %c0_6] : memref<2x1xf32, #tpu.memory_space<vmem>>, vector<2x1xf32>
    %5 = vector.broadcast %4 : vector<2x1xf32> to vector<2x256xf32>
    %6 = arith.addf %3, %5 : vector<2x256xf32>
    %cst_7 = arith.constant 0.000000e+00 : f32
    %7 = vector.broadcast %cst_7 : f32 to vector<2x256xf32>
    %8 = arith.maximumf %6, %7 : vector<2x256xf32>
    %c68_i32 = arith.constant 68 : i32
    %9 = tpu.dynamic_rotate %8 by %c68_i32 dim 1 : vector<2x256xf32>, i32 -> vector<2x256xf32>
    %10 = vector.extract_strided_slice %1 {offsets = [0, 0], sizes = [1, 256], strides = [1, 1]} : vector<9x256xf32> to vector<1x256xf32>
    %11 = vector.broadcast %10 : vector<1x256xf32> to vector<2x256xf32>
    %12 = arith.mulf %9, %11 : vector<2x256xf32>
    %c64_i32 = arith.constant 64 : i32
    %13 = tpu.dynamic_rotate %8 by %c64_i32 dim 1 : vector<2x256xf32>, i32 -> vector<2x256xf32>
    %14 = vector.extract_strided_slice %1 {offsets = [1, 0], sizes = [1, 256], strides = [1, 1]} : vector<9x256xf32> to vector<1x256xf32>
    %15 = vector.broadcast %14 : vector<1x256xf32> to vector<2x256xf32>
    %16 = arith.mulf %13, %15 : vector<2x256xf32>
    %c60_i32 = arith.constant 60 : i32
    %17 = tpu.dynamic_rotate %8 by %c60_i32 dim 1 : vector<2x256xf32>, i32 -> vector<2x256xf32>
    %18 = vector.extract_strided_slice %1 {offsets = [2, 0], sizes = [1, 256], strides = [1, 1]} : vector<9x256xf32> to vector<1x256xf32>
    %19 = vector.broadcast %18 : vector<1x256xf32> to vector<2x256xf32>
    %20 = arith.mulf %17, %19 : vector<2x256xf32>
    %c4_i32 = arith.constant 4 : i32
    %21 = tpu.dynamic_rotate %8 by %c4_i32 dim 1 : vector<2x256xf32>, i32 -> vector<2x256xf32>
    %22 = vector.extract_strided_slice %1 {offsets = [3, 0], sizes = [1, 256], strides = [1, 1]} : vector<9x256xf32> to vector<1x256xf32>
    %23 = vector.broadcast %22 : vector<1x256xf32> to vector<2x256xf32>
    %24 = arith.mulf %21, %23 : vector<2x256xf32>
    %c252_i32 = arith.constant 252 : i32
    %25 = tpu.dynamic_rotate %8 by %c252_i32 dim 1 : vector<2x256xf32>, i32 -> vector<2x256xf32>
    %26 = vector.extract_strided_slice %1 {offsets = [5, 0], sizes = [1, 256], strides = [1, 1]} : vector<9x256xf32> to vector<1x256xf32>
    %27 = vector.broadcast %26 : vector<1x256xf32> to vector<2x256xf32>
    %28 = arith.mulf %25, %27 : vector<2x256xf32>
    %c196_i32 = arith.constant 196 : i32
    %29 = tpu.dynamic_rotate %8 by %c196_i32 dim 1 : vector<2x256xf32>, i32 -> vector<2x256xf32>
    %30 = vector.extract_strided_slice %1 {offsets = [6, 0], sizes = [1, 256], strides = [1, 1]} : vector<9x256xf32> to vector<1x256xf32>
    %31 = vector.broadcast %30 : vector<1x256xf32> to vector<2x256xf32>
    %32 = arith.mulf %29, %31 : vector<2x256xf32>
    %c192_i32 = arith.constant 192 : i32
    %33 = tpu.dynamic_rotate %8 by %c192_i32 dim 1 : vector<2x256xf32>, i32 -> vector<2x256xf32>
    %34 = vector.extract_strided_slice %1 {offsets = [7, 0], sizes = [1, 256], strides = [1, 1]} : vector<9x256xf32> to vector<1x256xf32>
    %35 = vector.broadcast %34 : vector<1x256xf32> to vector<2x256xf32>
    %36 = arith.mulf %33, %35 : vector<2x256xf32>
    %c188_i32 = arith.constant 188 : i32
    %37 = tpu.dynamic_rotate %8 by %c188_i32 dim 1 : vector<2x256xf32>, i32 -> vector<2x256xf32>
    %38 = vector.extract_strided_slice %1 {offsets = [8, 0], sizes = [1, 256], strides = [1, 1]} : vector<9x256xf32> to vector<1x256xf32>
    %39 = vector.broadcast %38 : vector<1x256xf32> to vector<2x256xf32>
    %40 = arith.mulf %37, %39 : vector<2x256xf32>
    %41 = tpu.concatenate %12, %16, %20, %24, %8, %28, %32, %36, %40 in 0 : vector<2x256xf32>, vector<2x256xf32>, vector<2x256xf32>, vector<2x256xf32>, vector<2x256xf32>, vector<2x256xf32>, vector<2x256xf32>, vector<2x256xf32>, vector<2x256xf32> -> vector<18x256xf32>
    %c0_8 = arith.constant 0 : index
    %c0_9 = arith.constant 0 : index
    %42 = vector.load %arg4[%c0_8, %c0_9] : memref<2x18xf32, #tpu.memory_space<vmem>>, vector<2x18xf32>
    %cst_10 = arith.constant dense<0.000000e+00> : vector<2x256xf32>
    %43 = tpu.matmul %42, %41, %cst_10 {dimension_numbers = #tpu.dot_dimension_numbers<[1], [0], [0], [1], [0, 0, 1, 1], [], []>, precision = #tpu.contract_precision<fp32>} : vector<2x18xf32>, vector<18x256xf32>, vector<2x256xf32> -> vector<2x256xf32>
    %c0_11 = arith.constant 0 : index
    %c0_12 = arith.constant 0 : index
    %44 = vector.load %arg5[%c0_11, %c0_12] : memref<2x1xf32, #tpu.memory_space<vmem>>, vector<2x1xf32>
    %45 = vector.broadcast %44 : vector<2x1xf32> to vector<2x256xf32>
    %46 = arith.addf %43, %45 : vector<2x256xf32>
    %cst_13 = arith.constant 0.000000e+00 : f32
    %47 = vector.broadcast %cst_13 : f32 to vector<2x256xf32>
    %48 = arith.maximumf %46, %47 : vector<2x256xf32>
    %c68_i32_14 = arith.constant 68 : i32
    %49 = tpu.dynamic_rotate %48 by %c68_i32_14 dim 1 : vector<2x256xf32>, i32 -> vector<2x256xf32>
    %50 = vector.extract_strided_slice %1 {offsets = [0, 0], sizes = [1, 256], strides = [1, 1]} : vector<9x256xf32> to vector<1x256xf32>
    %51 = vector.broadcast %50 : vector<1x256xf32> to vector<2x256xf32>
    %52 = arith.mulf %49, %51 : vector<2x256xf32>
    %c64_i32_15 = arith.constant 64 : i32
    %53 = tpu.dynamic_rotate %48 by %c64_i32_15 dim 1 : vector<2x256xf32>, i32 -> vector<2x256xf32>
    %54 = vector.extract_strided_slice %1 {offsets = [1, 0], sizes = [1, 256], strides = [1, 1]} : vector<9x256xf32> to vector<1x256xf32>
    %55 = vector.broadcast %54 : vector<1x256xf32> to vector<2x256xf32>
    %56 = arith.mulf %53, %55 : vector<2x256xf32>
    %c60_i32_16 = arith.constant 60 : i32
    %57 = tpu.dynamic_rotate %48 by %c60_i32_16 dim 1 : vector<2x256xf32>, i32 -> vector<2x256xf32>
    %58 = vector.extract_strided_slice %1 {offsets = [2, 0], sizes = [1, 256], strides = [1, 1]} : vector<9x256xf32> to vector<1x256xf32>
    %59 = vector.broadcast %58 : vector<1x256xf32> to vector<2x256xf32>
    %60 = arith.mulf %57, %59 : vector<2x256xf32>
    %c4_i32_17 = arith.constant 4 : i32
    %61 = tpu.dynamic_rotate %48 by %c4_i32_17 dim 1 : vector<2x256xf32>, i32 -> vector<2x256xf32>
    %62 = vector.extract_strided_slice %1 {offsets = [3, 0], sizes = [1, 256], strides = [1, 1]} : vector<9x256xf32> to vector<1x256xf32>
    %63 = vector.broadcast %62 : vector<1x256xf32> to vector<2x256xf32>
    %64 = arith.mulf %61, %63 : vector<2x256xf32>
    %c252_i32_18 = arith.constant 252 : i32
    %65 = tpu.dynamic_rotate %48 by %c252_i32_18 dim 1 : vector<2x256xf32>, i32 -> vector<2x256xf32>
    %66 = vector.extract_strided_slice %1 {offsets = [5, 0], sizes = [1, 256], strides = [1, 1]} : vector<9x256xf32> to vector<1x256xf32>
    %67 = vector.broadcast %66 : vector<1x256xf32> to vector<2x256xf32>
    %68 = arith.mulf %65, %67 : vector<2x256xf32>
    %c196_i32_19 = arith.constant 196 : i32
    %69 = tpu.dynamic_rotate %48 by %c196_i32_19 dim 1 : vector<2x256xf32>, i32 -> vector<2x256xf32>
    %70 = vector.extract_strided_slice %1 {offsets = [6, 0], sizes = [1, 256], strides = [1, 1]} : vector<9x256xf32> to vector<1x256xf32>
    %71 = vector.broadcast %70 : vector<1x256xf32> to vector<2x256xf32>
    %72 = arith.mulf %69, %71 : vector<2x256xf32>
    %c192_i32_20 = arith.constant 192 : i32
    %73 = tpu.dynamic_rotate %48 by %c192_i32_20 dim 1 : vector<2x256xf32>, i32 -> vector<2x256xf32>
    %74 = vector.extract_strided_slice %1 {offsets = [7, 0], sizes = [1, 256], strides = [1, 1]} : vector<9x256xf32> to vector<1x256xf32>
    %75 = vector.broadcast %74 : vector<1x256xf32> to vector<2x256xf32>
    %76 = arith.mulf %73, %75 : vector<2x256xf32>
    %c188_i32_21 = arith.constant 188 : i32
    %77 = tpu.dynamic_rotate %48 by %c188_i32_21 dim 1 : vector<2x256xf32>, i32 -> vector<2x256xf32>
    %78 = vector.extract_strided_slice %1 {offsets = [8, 0], sizes = [1, 256], strides = [1, 1]} : vector<9x256xf32> to vector<1x256xf32>
    %79 = vector.broadcast %78 : vector<1x256xf32> to vector<2x256xf32>
    %80 = arith.mulf %77, %79 : vector<2x256xf32>
    %81 = tpu.concatenate %52, %56, %60, %64, %48, %68, %72, %76, %80 in 0 : vector<2x256xf32>, vector<2x256xf32>, vector<2x256xf32>, vector<2x256xf32>, vector<2x256xf32>, vector<2x256xf32>, vector<2x256xf32>, vector<2x256xf32>, vector<2x256xf32> -> vector<18x256xf32>
    %c0_22 = arith.constant 0 : index
    %c0_23 = arith.constant 0 : index
    %82 = vector.load %arg6[%c0_22, %c0_23] : memref<2x18xf32, #tpu.memory_space<vmem>>, vector<2x18xf32>
    %cst_24 = arith.constant dense<0.000000e+00> : vector<2x256xf32>
    %83 = tpu.matmul %82, %81, %cst_24 {dimension_numbers = #tpu.dot_dimension_numbers<[1], [0], [0], [1], [0, 0, 1, 1], [], []>, precision = #tpu.contract_precision<fp32>} : vector<2x18xf32>, vector<18x256xf32>, vector<2x256xf32> -> vector<2x256xf32>
    %c0_25 = arith.constant 0 : index
    %c0_26 = arith.constant 0 : index
    %84 = vector.load %arg7[%c0_25, %c0_26] : memref<2x1xf32, #tpu.memory_space<vmem>>, vector<2x1xf32>
    %85 = vector.broadcast %84 : vector<2x1xf32> to vector<2x256xf32>
    %86 = arith.addf %83, %85 : vector<2x256xf32>
    %cst_27 = arith.constant 0.000000e+00 : f32
    %87 = vector.broadcast %cst_27 : f32 to vector<2x256xf32>
    %88 = arith.maximumf %86, %87 : vector<2x256xf32>
    %c0_28 = arith.constant 0 : index
    %c0_29 = arith.constant 0 : index
    %89 = vector.load %arg8[%c0_28, %c0_29] : memref<1x2xf32, #tpu.memory_space<vmem>>, vector<1x2xf32>
    %cst_30 = arith.constant dense<0.000000e+00> : vector<1x256xf32>
    %90 = tpu.matmul %89, %88, %cst_30 {dimension_numbers = #tpu.dot_dimension_numbers<[1], [0], [0], [1], [0, 0, 1, 1], [], []>, precision = #tpu.contract_precision<fp32>} : vector<1x2xf32>, vector<2x256xf32>, vector<1x256xf32> -> vector<1x256xf32>
    %c0_31 = arith.constant 0 : index
    %c0_32 = arith.constant 0 : index
    %91 = vector.load %arg9[%c0_31, %c0_32] : memref<1x1xf32, #tpu.memory_space<vmem>>, vector<1x1xf32>
    %92 = vector.broadcast %91 : vector<1x1xf32> to vector<1x256xf32>
    %93 = arith.addf %90, %92 : vector<1x256xf32>
    %c0_33 = arith.constant 0 : index
    %c0_34 = arith.constant 0 : index
    %94 = vector.load %arg11[%c0_33, %c0_34] : memref<1x256xf32, #tpu.memory_space<vmem>>, vector<1x256xf32>
    tpu.vector_store %arg11[%c0_33, %c0_34], %93 {strides = array<i32>} : memref<1x256xf32, #tpu.memory_space<vmem>>, vector<1x256xf32>,
    return
  }
  func.func @transform_0(%arg0: i32) -> (i32, i32) {
    %c0_i32 = arith.constant 0 : i32
    %c0_i32_0 = arith.constant 0 : i32
    return %c0_i32, %arg0 : i32, i32
  }
  func.func @transform_1(%arg0: i32) -> (i32, i32) {
    %c0_i32 = arith.constant 0 : i32
    %c0_i32_0 = arith.constant 0 : i32
    %c0_i32_1 = arith.constant 0 : i32
    return %c0_i32, %c0_i32_0 : i32, i32
  }
  func.func @transform_2(%arg0: i32) -> (i32, i32) {
    %c0_i32 = arith.constant 0 : i32
    %c0_i32_0 = arith.constant 0 : i32
    %c0_i32_1 = arith.constant 0 : i32
    return %c0_i32, %c0_i32_0 : i32, i32
  }
  func.func @transform_3(%arg0: i32) -> (i32, i32) {
    %c0_i32 = arith.constant 0 : i32
    %c0_i32_0 = arith.constant 0 : i32
    %c0_i32_1 = arith.constant 0 : i32
    return %c0_i32, %c0_i32_0 : i32, i32
  }
  func.func @transform_4(%arg0: i32) -> (i32, i32) {
    %c0_i32 = arith.constant 0 : i32
    %c0_i32_0 = arith.constant 0 : i32
    %c0_i32_1 = arith.constant 0 : i32
    return %c0_i32, %c0_i32_0 : i32, i32
  }
  func.func @transform_5(%arg0: i32) -> (i32, i32) {
    %c0_i32 = arith.constant 0 : i32
    %c0_i32_0 = arith.constant 0 : i32
    %c0_i32_1 = arith.constant 0 : i32
    return %c0_i32, %c0_i32_0 : i32, i32
  }
  func.func @transform_6(%arg0: i32) -> (i32, i32) {
    %c0_i32 = arith.constant 0 : i32
    %c0_i32_0 = arith.constant 0 : i32
    %c0_i32_1 = arith.constant 0 : i32
    return %c0_i32, %c0_i32_0 : i32, i32
  }
  func.func @transform_7(%arg0: i32) -> (i32, i32) {
    %c0_i32 = arith.constant 0 : i32
    %c0_i32_0 = arith.constant 0 : i32
    %c0_i32_1 = arith.constant 0 : i32
    return %c0_i32, %c0_i32_0 : i32, i32
  }
  func.func @transform_8(%arg0: i32) -> (i32, i32) {
    %c0_i32 = arith.constant 0 : i32
    %c0_i32_0 = arith.constant 0 : i32
    %c0_i32_1 = arith.constant 0 : i32
    return %c0_i32, %c0_i32_0 : i32, i32
  }
  func.func @transform_9(%arg0: i32) -> (i32, i32) {
    %c0_i32 = arith.constant 0 : i32
    %c0_i32_0 = arith.constant 0 : i32
    %c0_i32_1 = arith.constant 0 : i32
    return %c0_i32, %c0_i32_0 : i32, i32
  }
  func.func @transform_10(%arg0: i32) -> (i32, i32) {
    %c0_i32 = arith.constant 0 : i32
    %c0_i32_0 = arith.constant 0 : i32
    return %c0_i32, %arg0 : i32, i32
  }
}

</mosaic_0001>

<llo_original>
// kernel: tpu_custom_call.1
$region0: #{tpu_custom_call.1}
  #allocation0 [shape = 'u32[]', space=smem, size = 0x4, offset = 0x4, fixed_abs, tag = 'smem constant byte address 0x4 - core index']
  #allocation1 [shape = 'u32[144,128]{1,0:T(1,128)}', space=vmem, size = 0x12000, scoped, tag = 'internal scratch']
  #allocation2 [shape = 'f32[1,1]{1,0:T(1,128)S(1)}', space=vmem, size = 0x200, scoped, tag = 'scoped memory for tpu_custom_call.1']
  %s0 = inlined_call_operand.hbm [shape: f32[32,512], index: 0, kind: input, shape index: {}]
  %s1 = inlined_call_operand.vmem [shape: f32[2,32], index: 1, kind: input, shape index: {}]
  %s2 = inlined_call_operand.vmem [shape: f32[2,1], index: 2, kind: input, shape index: {}]
  %s3 = inlined_call_operand.vmem [shape: f32[2,18], index: 3, kind: input, shape index: {}]
  %s4 = inlined_call_operand.vmem [shape: f32[2,1], index: 4, kind: input, shape index: {}]
  %s5 = inlined_call_operand.vmem [shape: f32[2,18], index: 5, kind: input, shape index: {}]
  %s6 = inlined_call_operand.vmem [shape: f32[2,1], index: 6, kind: input, shape index: {}]
  %s7 = inlined_call_operand.vmem [shape: f32[1,2], index: 7, kind: input, shape index: {}]
  %s8 = inlined_call_operand.<no memory space> [shape: f32[1,1], index: 8, kind: input, shape index: {}]
  %s9 = inlined_call_operand.vmem [shape: f32[9,256], index: 9, kind: input, shape index: {}]
  %s10 = inlined_call_operand.hbm [shape: f32[1,512], index: 10, kind: output, shape index: {}]
  %s11 = sld [smem:[#allocation0]]
  $region77: #{tpu_custom_call.1} parent=0
    _
  %s13 = ssub.s32 1, %s11
  %s14 = scalar_select 0, %s13, %s11
  %v15 = vstv %s8
  %16 = vst [vmem:[#allocation2] sm:$0x1] %v15
  $region1: #{tpu_custom_call.1} parent=0
    #allocation3 [shape = 'u8[65536]{0}', space=vmem, size = 0x10000, scoped, tag = 'input window, operand 0']
    #allocation4 [shape = 's32[2]{0}', space=sflag, size = 0x8, scoped, tag = 'scoped memory for tpu_custom_call.1']
    #allocation5 [shape = 's32[2]{0}', space=sflag, size = 0x8, scoped, tag = 'scoped memory for tpu_custom_call.1']
    #allocation6 [shape = 'u8[2048]{0}', space=vmem, size = 0x800, scoped, tag = 'output window, operand 0']
    %17 = vsyncpa [#allocation4], 0
    %s18 = scalar_lea.sflag [#allocation4], 1
    %19 = vsyncpa %s18, 0
    %20 = vsyncpa [#allocation5], 0
    %s21 = scalar_lea.sflag [#allocation5], 1
    %22 = vsyncpa %s21, 0
    loop: start=0, step=1, limit=4
    $region2: #{tpu_custom_call.1} parent=1 // loop_pre_header
      _
    $region3: #{tpu_custom_call.1} parent=1 // loop_header
      %s24 = sphi 0, %s28
      %p25 = scmp.ge.s32.totalorder %s24, 4
      %s34 = sphi 0, %s36
      %s37 = sphi 0, %s34
      %s38 = sphi 0, %s37
      %s54 = sphi 0, %s38
      %s58 = sphi 0, %s58
      %s60 = sphi 0, %s58
      %s61 = sphi 0, %s60
      %s75 = sphi 0, %s61
      %s79 = sphi 0, %s79
      %s81 = sphi 0, %s79
      %s82 = sphi 0, %s81
      %s96 = sphi 0, %s82
      %s100 = sphi 0, %s100
      %s102 = sphi 0, %s100
      %s103 = sphi 0, %s102
      %s117 = sphi 0, %s103
      %s121 = sphi 0, %s121
      %s123 = sphi 0, %s121
      %s124 = sphi 0, %s123
      %s138 = sphi 0, %s124
      %s142 = sphi 0, %s142
      %s144 = sphi 0, %s142
      %s145 = sphi 0, %s144
      %s159 = sphi 0, %s145
      %s163 = sphi 0, %s163
      %s165 = sphi 0, %s163
      %s166 = sphi 0, %s165
      %s180 = sphi 0, %s166
      %s184 = sphi 0, %s184
      %s186 = sphi 0, %s184
      %s187 = sphi 0, %s186
      %s201 = sphi 0, %s187
      %s205 = sphi 0, %s205
      %s207 = sphi 0, %s205
      %s208 = sphi 0, %s207
      %s222 = sphi 0, %s208
      %s226 = sphi 0, %s226
      %s228 = sphi 0, %s226
      %s229 = sphi 0, %s228
      %s243 = sphi 0, %s229
      %s249 = sphi 0, %s251
      %s252 = sphi 0, %s249
      %s253 = sphi 0, %s252
      %s269 = sphi 0, %s253
    $region4: #{tpu_custom_call.1} parent=1 // loop_header_branch
      %27 = sbr.rel (%p25) target = $region8
    $region5: #{tpu_custom_call.1} parent=1 // loop_body
      %s29 = ssub.s32 %s24, 1
      %s30 = ssub.s32 %s24, 2
      %s31 = sadd.s32 %s24, 1
      %s32 = ssub.s32 %s24, %s31
      %p33 = scmp.eq.s32.totalorder %s32, 0
      %s35 = sadd.s32 %s34, 1
      %s36 = scalar_select %p33, %s34, %s35
      %p39 = pneg %p33
      %p40 = scmp.eq.s32.totalorder %s24, 1
      %p41 = por %p39, %p40
      %p42 = scmp.ne.s32.totalorder %s34, %s37
      %p43 = scmp.eq.s32.totalorder %s24, 0
      %p44 = por %p42, %p43
      %p45 = scmp.ne.s32.totalorder %s34, %s37
      %p46 = scmp.eq.s32.totalorder %s29, 1
      %p47 = por %p45, %p46
      %p48 = scmp.ne.s32.totalorder %s37, %s38
      %p49 = scmp.eq.s32.totalorder %s29, 0
      %p50 = por %p48, %p49
      %p51 = scmp.ne.s32.totalorder %s37, %s38
      %p52 = scmp.eq.s32.totalorder %s30, 1
      %p53 = por %p51, %p52
      %p55 = scmp.ne.s32.totalorder %s38, %s54
      %p56 = scmp.eq.s32.totalorder %s30, 0
      %p57 = por %p55, %p56
      %s59 = sadd.s32 %s58, 1
      %p62 = scmp.eq.s32.totalorder %s24, 1
      %p63 = scmp.ne.s32.totalorder %s58, %s60
      %p64 = scmp.eq.s32.totalorder %s24, 0
      %p65 = por %p63, %p64
      %p66 = scmp.ne.s32.totalorder %s58, %s60
      %p67 = scmp.eq.s32.totalorder %s29, 1
      %p68 = por %p66, %p67
      %p69 = scmp.ne.s32.totalorder %s60, %s61
      %p70 = scmp.eq.s32.totalorder %s29, 0
      %p71 = por %p69, %p70
      %p72 = scmp.ne.s32.totalorder %s60, %s61
      %p73 = scmp.eq.s32.totalorder %s30, 1
      %p74 = por %p72, %p73
      %p76 = scmp.ne.s32.totalorder %s61, %s75
      %p77 = scmp.eq.s32.totalorder %s30, 0
      %p78 = por %p76, %p77
      %s80 = sadd.s32 %s79, 1
      %p83 = scmp.eq.s32.totalorder %s24, 1
      %p84 = scmp.ne.s32.totalorder %s79, %s81
      %p85 = scmp.eq.s32.totalorder %s24, 0
      %p86 = por %p84, %p85
      %p87 = scmp.ne.s32.totalorder %s79, %s81
      %p88 = scmp.eq.s32.totalorder %s29, 1
      %p89 = por %p87, %p88
      %p90 = scmp.ne.s32.totalorder %s81, %s82
      %p91 = scmp.eq.s32.totalorder %s29, 0
      %p92 = por %p90, %p91
      %p93 = scmp.ne.s32.totalorder %s81, %s82
      %p94 = scmp.eq.s32.totalorder %s30, 1
      %p95 = por %p93, %p94
      %p97 = scmp.ne.s32.totalorder %s82, %s96
      %p98 = scmp.eq.s32.totalorder %s30, 0
      %p99 = por %p97, %p98
      %s101 = sadd.s32 %s100, 1
      %p104 = scmp.eq.s32.totalorder %s24, 1
      %p105 = scmp.ne.s32.totalorder %s100, %s102
      %p106 = scmp.eq.s32.totalorder %s24, 0
      %p107 = por %p105, %p106
      %p108 = scmp.ne.s32.totalorder %s100, %s102
      %p109 = scmp.eq.s32.totalorder %s29, 1
      %p110 = por %p108, %p109
      %p111 = scmp.ne.s32.totalorder %s102, %s103
      %p112 = scmp.eq.s32.totalorder %s29, 0
      %p113 = por %p111, %p112
      %p114 = scmp.ne.s32.totalorder %s102, %s103
      %p115 = scmp.eq.s32.totalorder %s30, 1
      %p116 = por %p114, %p115
      %p118 = scmp.ne.s32.totalorder %s103, %s117
      %p119 = scmp.eq.s32.totalorder %s30, 0
      %p120 = por %p118, %p119
      %s122 = sadd.s32 %s121, 1
      %p125 = scmp.eq.s32.totalorder %s24, 1
      %p126 = scmp.ne.s32.totalorder %s121, %s123
      %p127 = scmp.eq.s32.totalorder %s24, 0
      %p128 = por %p126, %p127
      %p129 = scmp.ne.s32.totalorder %s121, %s123
      %p130 = scmp.eq.s32.totalorder %s29, 1
      %p131 = por %p129, %p130
      %p132 = scmp.ne.s32.totalorder %s123, %s124
      %p133 = scmp.eq.s32.totalorder %s29, 0
      %p134 = por %p132, %p133
      %p135 = scmp.ne.s32.totalorder %s123, %s124
      %p136 = scmp.eq.s32.totalorder %s30, 1
      %p137 = por %p135, %p136
      %p139 = scmp.ne.s32.totalorder %s124, %s138
      %p140 = scmp.eq.s32.totalorder %s30, 0
      %p141 = por %p139, %p140
      %s143 = sadd.s32 %s142, 1
      %p146 = scmp.eq.s32.totalorder %s24, 1
      %p147 = scmp.ne.s32.totalorder %s142, %s144
      %p148 = scmp.eq.s32.totalorder %s24, 0
      %p149 = por %p147, %p148
      %p150 = scmp.ne.s32.totalorder %s142, %s144
      %p151 = scmp.eq.s32.totalorder %s29, 1
      %p152 = por %p150, %p151
      %p153 = scmp.ne.s32.totalorder %s144, %s145
      %p154 = scmp.eq.s32.totalorder %s29, 0
      %p155 = por %p153, %p154
      %p156 = scmp.ne.s32.totalorder %s144, %s145
      %p157 = scmp.eq.s32.totalorder %s30, 1
      %p158 = por %p156, %p157
      %p160 = scmp.ne.s32.totalorder %s145, %s159
      %p161 = scmp.eq.s32.totalorder %s30, 0
      %p162 = por %p160, %p161
      %s164 = sadd.s32 %s163, 1
      %p167 = scmp.eq.s32.totalorder %s24, 1
      %p168 = scmp.ne.s32.totalorder %s163, %s165
      %p169 = scmp.eq.s32.totalorder %s24, 0
      %p170 = por %p168, %p169
      %p171 = scmp.ne.s32.totalorder %s163, %s165
      %p172 = scmp.eq.s32.totalorder %s29, 1
      %p173 = por %p171, %p172
      %p174 = scmp.ne.s32.totalorder %s165, %s166
      %p175 = scmp.eq.s32.totalorder %s29, 0
      %p176 = por %p174, %p175
      %p177 = scmp.ne.s32.totalorder %s165, %s166
      %p178 = scmp.eq.s32.totalorder %s30, 1
      %p179 = por %p177, %p178
      %p181 = scmp.ne.s32.totalorder %s166, %s180
      %p182 = scmp.eq.s32.totalorder %s30, 0
      %p183 = por %p181, %p182
      %s185 = sadd.s32 %s184, 1
      %p188 = scmp.eq.s32.totalorder %s24, 1
      %p189 = scmp.ne.s32.totalorder %s184, %s186
      %p190 = scmp.eq.s32.totalorder %s24, 0
      %p191 = por %p189, %p190
      %p192 = scmp.ne.s32.totalorder %s184, %s186
      %p193 = scmp.eq.s32.totalorder %s29, 1
      %p194 = por %p192, %p193
      %p195 = scmp.ne.s32.totalorder %s186, %s187
      %p196 = scmp.eq.s32.totalorder %s29, 0
      %p197 = por %p195, %p196
      %p198 = scmp.ne.s32.totalorder %s186, %s187
      %p199 = scmp.eq.s32.totalorder %s30, 1
      %p200 = por %p198, %p199
      %p202 = scmp.ne.s32.totalorder %s187, %s201
      %p203 = scmp.eq.s32.totalorder %s30, 0
      %p204 = por %p202, %p203
      %s206 = sadd.s32 %s205, 1
      %p209 = scmp.eq.s32.totalorder %s24, 1
      %p210 = scmp.ne.s32.totalorder %s205, %s207
      %p211 = scmp.eq.s32.totalorder %s24, 0
      %p212 = por %p210, %p211
      %p213 = scmp.ne.s32.totalorder %s205, %s207
      %p214 = scmp.eq.s32.totalorder %s29, 1
      %p215 = por %p213, %p214
      %p216 = scmp.ne.s32.totalorder %s207, %s208
      %p217 = scmp.eq.s32.totalorder %s29, 0
      %p218 = por %p216, %p217
      %p219 = scmp.ne.s32.totalorder %s207, %s208
      %p220 = scmp.eq.s32.totalorder %s30, 1
      %p221 = por %p219, %p220
      %p223 = scmp.ne.s32.totalorder %s208, %s222
      %p224 = scmp.eq.s32.totalorder %s30, 0
      %p225 = por %p223, %p224
      %s227 = sadd.s32 %s226, 1
      %p230 = scmp.eq.s32.totalorder %s24, 1
      %p231 = scmp.ne.s32.totalorder %s226, %s228
      %p232 = scmp.eq.s32.totalorder %s24, 0
      %p233 = por %p231, %p232
      %p234 = scmp.ne.s32.totalorder %s226, %s228
      %p235 = scmp.eq.s32.totalorder %s29, 1
      %p236 = por %p234, %p235
      %p237 = scmp.ne.s32.totalorder %s228, %s229
      %p238 = scmp.eq.s32.totalorder %s29, 0
      %p239 = por %p237, %p238
      %p240 = scmp.ne.s32.totalorder %s228, %s229
      %p241 = scmp.eq.s32.totalorder %s30, 1
      %p242 = por %p240, %p241
      %p244 = scmp.ne.s32.totalorder %s229, %s243
      %p245 = scmp.eq.s32.totalorder %s30, 0
      %p246 = por %p244, %p245
      %s247 = ssub.s32 %s24, %s31
      %p248 = scmp.eq.s32.totalorder %s247, 0
      %s250 = sadd.s32 %s249, 1
      %s251 = scalar_select %p248, %s249, %s250
      %p254 = pneg %p248
      %p255 = scmp.eq.s32.totalorder %s24, 1
      %p256 = por %p254, %p255
      %p257 = scmp.ne.s32.totalorder %s249, %s252
      %p258 = scmp.eq.s32.totalorder %s24, 0
      %p259 = por %p257, %p258
      %p260 = scmp.ne.s32.totalorder %s249, %s252
      %p261 = scmp.eq.s32.totalorder %s29, 1
      %p262 = por %p260, %p261
      %p263 = scmp.ne.s32.totalorder %s252, %s253
      %p264 = scmp.eq.s32.totalorder %s29, 0
      %p265 = por %p263, %p264
      %p266 = scmp.ne.s32.totalorder %s252, %s253
      %p267 = scmp.eq.s32.totalorder %s30, 1
      %p268 = por %p266, %p267
      %p270 = scmp.ne.s32.totalorder %s253, %s269
      %p271 = scmp.eq.s32.totalorder %s30, 0
      %p272 = por %p270, %p271
      %p273 = scmp.le.s32.totalorder 1, %s24
      %p274 = scmp.lt.s32.totalorder %s24, 3
      %p275 = pnand %p273, %p274
      %p276 = pneg %p275
      // Predicated region
      $region9: #{tpu_custom_call.1} parent=5 // pred_check
        _
      $region10: #{tpu_custom_call.1} parent=5 // pred_check_branch
        %278 = sbr.rel (%p275) target = $region12
      $region11: #{tpu_custom_call.1} parent=5 // pred_region
        %s279 = ssub.s32 %s24, 1
        // Predicated region
        $region13: #{tpu_custom_call.1} parent=11 // pred_check
          %p280 = pneg %p71
        $region14: #{tpu_custom_call.1} parent=11 // pred_check_branch
          %282 = sbr.rel (%p280) target = $region16
        $region15: #{tpu_custom_call.1} parent=11 // pred_region
          _
        $region16: #{tpu_custom_call.1} parent=11 // pred_fallthru
          _
        // Predicated region
        $region17: #{tpu_custom_call.1} parent=11 // pred_check
          %p283 = pneg %p92
        $region18: #{tpu_custom_call.1} parent=11 // pred_check_branch
          %285 = sbr.rel (%p283) target = $region20
        $region19: #{tpu_custom_call.1} parent=11 // pred_region
          _
        $region20: #{tpu_custom_call.1} parent=11 // pred_fallthru
          _
        // Predicated region
        $region21: #{tpu_custom_call.1} parent=11 // pred_check
          %p286 = pneg %p113
        $region22: #{tpu_custom_call.1} parent=11 // pred_check_branch
          %288 = sbr.rel (%p286) target = $region24
        $region23: #{tpu_custom_call.1} parent=11 // pred_region
          _
        $region24: #{tpu_custom_call.1} parent=11 // pred_fallthru
          _
        // Predicated region
        $region25: #{tpu_custom_call.1} parent=11 // pred_check
          %p289 = pneg %p134
        $region26: #{tpu_custom_call.1} parent=11 // pred_check_branch
          %291 = sbr.rel (%p289) target = $region28
        $region27: #{tpu_custom_call.1} parent=11 // pred_region
          _
        $region28: #{tpu_custom_call.1} parent=11 // pred_fallthru
          _
        // Predicated region
        $region29: #{tpu_custom_call.1} parent=11 // pred_check
          %p292 = pneg %p155
        $region30: #{tpu_custom_call.1} parent=11 // pred_check_branch
          %294 = sbr.rel (%p292) target = $region32
        $region31: #{tpu_custom_call.1} parent=11 // pred_region
          _
        $region32: #{tpu_custom_call.1} parent=11 // pred_fallthru
          _
        // Predicated region
        $region33: #{tpu_custom_call.1} parent=11 // pred_check
          %p295 = pneg %p176
        $region34: #{tpu_custom_call.1} parent=11 // pred_check_branch
          %297 = sbr.rel (%p295) target = $region36
        $region35: #{tpu_custom_call.1} parent=11 // pred_region
          _
        $region36: #{tpu_custom_call.1} parent=11 // pred_fallthru
          _
        // Predicated region
        $region37: #{tpu_custom_call.1} parent=11 // pred_check
          %p298 = pneg %p197
        $region38: #{tpu_custom_call.1} parent=11 // pred_check_branch
          %300 = sbr.rel (%p298) target = $region40
        $region39: #{tpu_custom_call.1} parent=11 // pred_region
          _
        $region40: #{tpu_custom_call.1} parent=11 // pred_fallthru
          _
        // Predicated region
        $region41: #{tpu_custom_call.1} parent=11 // pred_check
          %p301 = pneg %p218
        $region42: #{tpu_custom_call.1} parent=11 // pred_check_branch
          %303 = sbr.rel (%p301) target = $region44
        $region43: #{tpu_custom_call.1} parent=11 // pred_region
          _
        $region44: #{tpu_custom_call.1} parent=11 // pred_fallthru
          _
        // Predicated region
        $region45: #{tpu_custom_call.1} parent=11 // pred_check
          %p304 = pneg %p239
        $region46: #{tpu_custom_call.1} parent=11 // pred_check_branch
          %306 = sbr.rel (%p304) target = $region48
        $region47: #{tpu_custom_call.1} parent=11 // pred_region
          _
        $region48: #{tpu_custom_call.1} parent=11 // pred_fallthru
          _
      $region12: #{tpu_custom_call.1} parent=5 // pred_fallthru
        _
      %p307 = scmp.lt.s32.totalorder %s24, 2
      // Predicated region
      $region49: #{tpu_custom_call.1} parent=5 // pred_check
        %p308 = pneg %p307
      $region50: #{tpu_custom_call.1} parent=5 // pred_check_branch
        %310 = sbr.rel (%p308) target = $region52
      $region51: #{tpu_custom_call.1} parent=5 // pred_region
        // Predicated region
        $region53: #{tpu_custom_call.1} parent=51 // pred_check
          %p311 = pneg %p44
        $region54: #{tpu_custom_call.1} parent=51 // pred_check_branch
          %313 = sbr.rel (%p311) target = $region56
        $region55: #{tpu_custom_call.1} parent=51 // pred_region
          %s314 = sand.u32 %s34, 1
          %s315 = scalar_lea.sflag [#allocation4], %s314
          %s316 = sand.u32 %s34, 1
          %s317 = smul.addr %s316, 64
          %s318 = scalar_lea.vmem [#allocation3], %s317
          %s319 = smul.u32 2, %s24
          %s321 = ssub.s32 1024, 1024
          %322 = vsyncadd %s315, %s321
          %s323 = smul.addr %s319, 128
          %s324 = scalar_lea.hbm %s0, %s323
          %s325 = sshll.u32 %s318, 4
          %s326 = int_to_ptr.vmem [resolvable:$true] %s325
          %331 = dma.hbm_to_vmem [thread:$0]  %s324, 1024, %s326, %s315, 512, 256, 16
        $region56: #{tpu_custom_call.1} parent=51 // pred_fallthru
          _
      $region52: #{tpu_custom_call.1} parent=5 // pred_fallthru
        _
      %p332 = scmp.le.s32.totalorder 1, %s24
      %p333 = scmp.lt.s32.totalorder %s24, 3
      %p334 = pnand %p332, %p333
      %p335 = pneg %p334
      // Predicated region
      $region57: #{tpu_custom_call.1} parent=5 // pred_check
        _
      $region58: #{tpu_custom_call.1} parent=5 // pred_check_branch
        %337 = sbr.rel (%p334) target = $region60
      $region59: #{tpu_custom_call.1} parent=5 // pred_region
        %s338 = ssub.s32 %s24, 1
        %s339 = sand.u32 %s37, 1
        %s340 = scalar_lea.sflag [#allocation4], %s339
        %s341 = sand.u32 %s37, 1
        %s342 = smul.addr %s341, 64
        %s343 = scalar_lea.vmem [#allocation3], %s342
        // Predicated region
        $region61: #{tpu_custom_call.1} parent=59 // pred_check
          %p344 = pneg %p50
        $region62: #{tpu_custom_call.1} parent=59 // pred_check_branch
          %346 = sbr.rel (%p344) target = $region64
        $region63: #{tpu_custom_call.1} parent=59 // pred_region
          %347 = dma.done %s340, 1024
        $region64: #{tpu_custom_call.1} parent=59 // pred_fallthru
          _
        %s348 = sand.u32 %s37, 1
        %s349 = scalar_lea.sflag [#allocation4], %s348
        %s350 = sand.u32 %s37, 1
        %s351 = smul.addr %s350, 64
        %s352 = scalar_lea.vmem [#allocation3], %s351
        %p353 = pneg %p50
        %p354 = pneg %p47
        %p355 = pneg %p71
        %p356 = pneg %p68
        %p357 = pneg %p92
        %p358 = pneg %p89
        %p359 = pneg %p113
        %p360 = pneg %p110
        %p361 = pneg %p134
        %p362 = pneg %p131
        %p363 = pneg %p155
        %p364 = pneg %p152
        %p365 = pneg %p176
        %p366 = pneg %p173
        %p367 = pneg %p197
        %p368 = pneg %p194
        %p369 = pneg %p218
        %p370 = pneg %p215
        %p371 = pneg %p239
        %p372 = pneg %p236
        %p373 = pneg %p265
        %p374 = pneg %p262
        %s375 = sand.u32 %s252, 1
        %s376 = scalar_lea.sflag [#allocation5], %s375
        %s377 = sand.u32 %s252, 1
        %s378 = smul.addr %s377, 2
        %s379 = scalar_lea.vmem [#allocation6], %s378
        %s380 = smul.u32 2, %s29
        %s381 = smul.u32 2, %s29
        %v382 = vld [vmem:[%s343] sm:$0xff]
        %v383 = vld [vmem:[%s343 + $0x8] sm:$0xff]
        %v384 = vld [vmem:[%s343 + $0x10] sm:$0xff]
        %v385 = vld [vmem:[%s343 + $0x18] sm:$0xff]
        %v386 = vld [vmem:[%s343 + $0x20] sm:$0xff]
        %v387 = vld [vmem:[%s343 + $0x28] sm:$0xff]
        %v388 = vld [vmem:[%s343 + $0x30] sm:$0xff]
        %v389 = vld [vmem:[%s343 + $0x38] sm:$0xff]
        %v390 = vld [vmem:[%s9] sm:$0xff]
        %v391 = vld [vmem:[%s9 + $0x8] sm:$0xff]
        %v392 = vld [vmem:[%s9 + $0x10] sm:$0x1]
        %v393 = vld [vmem:[%s9 + $0x18] sm:$0x1]
        %v394 = vld [vmem:[%s1] sm:$0x3]
        %v395 = vld [vmem:[%s2] sm:$0x3]
        %397 = vset.pattern.permute.xlu0 0
        %398 = vperm.xlu0 %397, %v395
        %v399 = vpop.permute.xlu0 %398
        %vm401 = vcmask 261120
        %v403 = vsel %vm401, %v394, 0
        %v405 = vand.u32 %v383, 4294901760
        %406 = vmatprep.subr.mxu0 %v405
        %v407 = vand.u32 %v382, 4294901760
        %408 = vmatpush1.msra.mxu0 %v407
        %v409 = vand.u32 %v385, 4294901760
        %410 = vmatprep.subr.mxu0 %v409
        %v411 = vand.u32 %v384, 4294901760
        %412 = vmatpush1.msra.mxu0 %v411
        %v413 = vand.u32 %v387, 4294901760
        %414 = vmatprep.subr.mxu0 %v413
        %v415 = vand.u32 %v386, 4294901760
        %416 = vmatpush1.msra.mxu0 %v415
        %v417 = vand.u32 %v389, 4294901760
        %418 = vmatprep.subr.mxu0 %v417
        %v419 = vand.u32 %v388, 4294901760
        %420 = vmatpush1.msra.mxu0 %v419
        %421 = vmatprep.subr.mxu0 0.0
        %422 = vmatpush1.msra.mxu0 0.0
        %423 = vmatprep.subr.mxu0 0.0
        %424 = vmatpush1.msra.mxu0 0.0
        %425 = vmatprep.subr.mxu0 0.0
        %426 = vmatpush1.msra.mxu0 0.0
        %427 = vmatprep.subr.mxu0 0.0
        %428 = vmatpush1.msra.mxu0 0.0
        %429 = vmatprep.subr.mxu0 0.0
        %430 = vmatpush1.msra.mxu0 0.0
        %431 = vmatprep.subr.mxu0 0.0
        %432 = vmatpush1.msra.mxu0 0.0
        %433 = vmatprep.subr.mxu0 0.0
        %434 = vmatpush1.msra.mxu0 0.0
        %435 = vmatprep.subr.mxu0 0.0
        %436 = vmatpush1.msra.mxu0 0.0
        %437 = vmatprep.subr.mxu0 0.0
        %438 = vmatpush1.msra.mxu0 0.0
        %439 = vmatprep.subr.mxu0 0.0
        %440 = vmatpush1.msra.mxu0 0.0
        %441 = vmatprep.subr.mxu0 0.0
        %442 = vmatpush1.msra.mxu0 0.0
        %443 = vmatprep.subr.mxu0 0.0
        %444 = vmatpush1.msra.mxu0 0.0
        %445 = vmatprep.subr.mxu0 0.0
        %446 = vmatpush1.msra.mxu0 0.0
        %447 = vmatprep.subr.mxu0 0.0
        %448 = vmatpush1.msra.mxu0 0.0
        %449 = vmatprep.subr.mxu0 0.0
        %450 = vmatpush1.msra.mxu0 0.0
        %451 = vmatprep.subr.mxu0 0.0
        %452 = vmatpush1.msra.mxu0 0.0
        %453 = vmatprep.subr.mxu0 0.0
        %454 = vmatpush1.msra.mxu0 0.0
        %455 = vmatprep.subr.mxu0 0.0
        %456 = vmatpush1.msra.mxu0 0.0
        %457 = vmatprep.subr.mxu0 0.0
        %458 = vmatpush1.msra.mxu0 0.0
        %459 = vmatprep.subr.mxu0 0.0
        %460 = vmatpush1.msra.mxu0 0.0
        %461 = vmatprep.subr.mxu0 0.0
        %462 = vmatpush1.msra.mxu0 0.0
        %463 = vmatprep.subr.mxu0 0.0
        %464 = vmatpush1.msra.mxu0 0.0
        %465 = vmatprep.subr.mxu0 0.0
        %466 = vmatpush1.msra.mxu0 0.0
        %467 = vmatprep.subr.mxu0 0.0
        %468 = vmatpush1.msra.mxu0 0.0
        %469 = vmatprep.subr.mxu0 0.0
        %470 = vmatpush1.msra.mxu0 0.0
        %471 = vmatprep.subr.mxu0 0.0
        %472 = vmatpush1.msra.mxu0 0.0
        %473 = vmatprep.subr.mxu0 0.0
        %474 = vmatpush1.msra.mxu0 0.0
        %475 = vmatprep.subr.mxu0 0.0
        %476 = vmatpush1.msra.mxu0 0.0
        %477 = vmatprep.mubr.f32.mxu0 0.0
        %v478 = vand.u32 %v403, 4294901760
        %v479 = vsub.f32 %v403, %v478
        %v480 = vand.u32 %v479, 4294901760
        %v481 = vsub.f32 %v479, %v480
        %v482 = vand.u32 %v481, 4294901760
        %483 = vmatmul.mubr.f32.gmra.mrb[0].mxu0 %v482
        %v484 = vpop.f32.mrb[0].mxu0
        %v485 = vadd.f32 %v399, %v484
        %v486 = vpop.f32.mrb[0].mxu0
        %v487 = vadd.f32 %v399, %v486
        %488 = vdwg.mxu0
        %v489 = vand.u32 %v383, 4294901760
        %v490 = vsub.f32 %v383, %v489
        %v491 = vand.u32 %v490, 4294901760
        %v492 = vsub.f32 %v490, %v491
        %v493 = vand.u32 %v492, 4294901760
        %494 = vmatprep.subr.mxu0 %v493
        %v495 = vand.u32 %v382, 4294901760
        %v496 = vsub.f32 %v382, %v495
        %v497 = vand.u32 %v496, 4294901760
        %v498 = vsub.f32 %v496, %v497
        %v499 = vand.u32 %v498, 4294901760
        %500 = vmatpush1.msra.mxu0 %v499
        %v501 = vand.u32 %v385, 4294901760
        %v502 = vsub.f32 %v385, %v501
        %v503 = vand.u32 %v502, 4294901760
        %v504 = vsub.f32 %v502, %v503
        %v505 = vand.u32 %v504, 4294901760
        %506 = vmatprep.subr.mxu0 %v505
        %v507 = vand.u32 %v384, 4294901760
        %v508 = vsub.f32 %v384, %v507
        %v509 = vand.u32 %v508, 4294901760
        %v510 = vsub.f32 %v508, %v509
        %v511 = vand.u32 %v510, 4294901760
        %512 = vmatpush1.msra.mxu0 %v511
        %v513 = vand.u32 %v387, 4294901760
        %v514 = vsub.f32 %v387, %v513
        %v515 = vand.u32 %v514, 4294901760
        %v516 = vsub.f32 %v514, %v515
        %v517 = vand.u32 %v516, 4294901760
        %518 = vmatprep.subr.mxu0 %v517
        %v519 = vand.u32 %v386, 4294901760
        %v520 = vsub.f32 %v386, %v519
        %v521 = vand.u32 %v520, 4294901760
        %v522 = vsub.f32 %v520, %v521
        %v523 = vand.u32 %v522, 4294901760
        %524 = vmatpush1.msra.mxu0 %v523
        %v525 = vand.u32 %v389, 4294901760
        %v526 = vsub.f32 %v389, %v525
        %v527 = vand.u32 %v526, 4294901760
        %v528 = vsub.f32 %v526, %v527
        %v529 = vand.u32 %v528, 4294901760
        %530 = vmatprep.subr.mxu0 %v529
        %v531 = vand.u32 %v388, 4294901760
        %v532 = vsub.f32 %v388, %v531
        %v533 = vand.u32 %v532, 4294901760
        %v534 = vsub.f32 %v532, %v533
        %v535 = vand.u32 %v534, 4294901760
        %536 = vmatpush1.msra.mxu0 %v535
        %537 = vmatprep.subr.mxu0 0.0
        %538 = vmatpush1.msra.mxu0 0.0
        %539 = vmatprep.subr.mxu0 0.0
        %540 = vmatpush1.msra.mxu0 0.0
        %541 = vmatprep.subr.mxu0 0.0
        %542 = vmatpush1.msra.mxu0 0.0
        %543 = vmatprep.subr.mxu0 0.0
        %544 = vmatpush1.msra.mxu0 0.0
        %545 = vmatprep.subr.mxu0 0.0
        %546 = vmatpush1.msra.mxu0 0.0
        %547 = vmatprep.subr.mxu0 0.0
        %548 = vmatpush1.msra.mxu0 0.0
        %549 = vmatprep.subr.mxu0 0.0
        %550 = vmatpush1.msra.mxu0 0.0
        %551 = vmatprep.subr.mxu0 0.0
        %552 = vmatpush1.msra.mxu0 0.0
        %553 = vmatprep.subr.mxu0 0.0
        %554 = vmatpush1.msra.mxu0 0.0
        %555 = vmatprep.subr.mxu0 0.0
        %556 = vmatpush1.msra.mxu0 0.0
        %557 = vmatprep.subr.mxu0 0.0
        %558 = vmatpush1.msra.mxu0 0.0
        %559 = vmatprep.subr.mxu0 0.0
        %560 = vmatpush1.msra.mxu0 0.0
        %561 = vmatprep.subr.mxu0 0.0
        %562 = vmatpush1.msra.mxu0 0.0
        %563 = vmatprep.subr.mxu0 0.0
        %564 = vmatpush1.msra.mxu0 0.0
        %565 = vmatprep.subr.mxu0 0.0
        %566 = vmatpush1.msra.mxu0 0.0
        %567 = vmatprep.subr.mxu0 0.0
        %568 = vmatpush1.msra.mxu0 0.0
        %569 = vmatprep.subr.mxu0 0.0
        %570 = vmatpush1.msra.mxu0 0.0
        %571 = vmatprep.subr.mxu0 0.0
        %572 = vmatpush1.msra.mxu0 0.0
        %573 = vmatprep.subr.mxu0 0.0
        %574 = vmatpush1.msra.mxu0 0.0
        %575 = vmatprep.subr.mxu0 0.0
        %576 = vmatpush1.msra.mxu0 0.0
        %577 = vmatprep.subr.mxu0 0.0
        %578 = vmatpush1.msra.mxu0 0.0
        %579 = vmatprep.subr.mxu0 0.0
        %580 = vmatpush1.msra.mxu0 0.0
        %581 = vmatprep.subr.mxu0 0.0
        %582 = vmatpush1.msra.mxu0 0.0
        %583 = vmatprep.subr.mxu0 0.0
        %584 = vmatpush1.msra.mxu0 0.0
        %585 = vmatprep.subr.mxu0 0.0
        %586 = vmatpush1.msra.mxu0 0.0
        %587 = vmatprep.subr.mxu0 0.0
        %588 = vmatpush1.msra.mxu0 0.0
        %589 = vmatprep.subr.mxu0 0.0
        %590 = vmatpush1.msra.mxu0 0.0
        %591 = vmatprep.subr.mxu0 0.0
        %592 = vmatpush1.msra.mxu0 0.0
        %593 = vmatprep.mubr.f32.mxu0 0.0
        %v594 = vand.u32 %v403, 4294901760
        %595 = vmatmul.mubr.f32.gmra.mrb[0].mxu0 %v594
        %v596 = vpop.f32.mrb[0].mxu0
        %v597 = vadd.f32 %v485, %v596
        %v598 = vpop.f32.mrb[0].mxu0
        %v599 = vadd.f32 %v487, %v598
        %600 = vdwg.mxu0
        %v601 = vand.u32 %v383, 4294901760
        %v602 = vsub.f32 %v383, %v601
        %603 = vmatprep.subr.mxu0 %v602
        %v604 = vand.u32 %v382, 4294901760
        %v605 = vsub.f32 %v382, %v604
        %606 = vmatpush1.msra.mxu0 %v605
        %v607 = vand.u32 %v385, 4294901760
        %v608 = vsub.f32 %v385, %v607
        %609 = vmatprep.subr.mxu0 %v608
        %v610 = vand.u32 %v384, 4294901760
        %v611 = vsub.f32 %v384, %v610
        %612 = vmatpush1.msra.mxu0 %v611
        %v613 = vand.u32 %v387, 4294901760
        %v614 = vsub.f32 %v387, %v613
        %615 = vmatprep.subr.mxu0 %v614
        %v616 = vand.u32 %v386, 4294901760
        %v617 = vsub.f32 %v386, %v616
        %618 = vmatpush1.msra.mxu0 %v617
        %v619 = vand.u32 %v389, 4294901760
        %v620 = vsub.f32 %v389, %v619
        %621 = vmatprep.subr.mxu0 %v620
        %v622 = vand.u32 %v388, 4294901760
        %v623 = vsub.f32 %v388, %v622
        %624 = vmatpush1.msra.mxu0 %v623
        %625 = vmatprep.subr.mxu0 0.0
        %626 = vmatpush1.msra.mxu0 0.0
        %627 = vmatprep.subr.mxu0 0.0
        %628 = vmatpush1.msra.mxu0 0.0
        %629 = vmatprep.subr.mxu0 0.0
        %630 = vmatpush1.msra.mxu0 0.0
        %631 = vmatprep.subr.mxu0 0.0
        %632 = vmatpush1.msra.mxu0 0.0
        %633 = vmatprep.subr.mxu0 0.0
        %634 = vmatpush1.msra.mxu0 0.0
        %635 = vmatprep.subr.mxu0 0.0
        %636 = vmatpush1.msra.mxu0 0.0
        %637 = vmatprep.subr.mxu0 0.0
        %638 = vmatpush1.msra.mxu0 0.0
        %639 = vmatprep.subr.mxu0 0.0
        %640 = vmatpush1.msra.mxu0 0.0
        %641 = vmatprep.subr.mxu0 0.0
        %642 = vmatpush1.msra.mxu0 0.0
        %643 = vmatprep.subr.mxu0 0.0
        %644 = vmatpush1.msra.mxu0 0.0
        %645 = vmatprep.subr.mxu0 0.0
        %646 = vmatpush1.msra.mxu0 0.0
        %647 = vmatprep.subr.mxu0 0.0
        %648 = vmatpush1.msra.mxu0 0.0
        %649 = vmatprep.subr.mxu0 0.0
        %650 = vmatpush1.msra.mxu0 0.0
        %651 = vmatprep.subr.mxu0 0.0
        %652 = vmatpush1.msra.mxu0 0.0
        %653 = vmatprep.subr.mxu0 0.0
        %654 = vmatpush1.msra.mxu0 0.0
        %655 = vmatprep.subr.mxu0 0.0
        %656 = vmatpush1.msra.mxu0 0.0
        %657 = vmatprep.subr.mxu0 0.0
        %658 = vmatpush1.msra.mxu0 0.0
        %659 = vmatprep.subr.mxu0 0.0
        %660 = vmatpush1.msra.mxu0 0.0
        %661 = vmatprep.subr.mxu0 0.0
        %662 = vmatpush1.msra.mxu0 0.0
        %663 = vmatprep.subr.mxu0 0.0
        %664 = vmatpush1.msra.mxu0 0.0
        %665 = vmatprep.subr.mxu0 0.0
        %666 = vmatpush1.msra.mxu0 0.0
        %667 = vmatprep.subr.mxu0 0.0
        %668 = vmatpush1.msra.mxu0 0.0
        %669 = vmatprep.subr.mxu0 0.0
        %670 = vmatpush1.msra.mxu0 0.0
        %671 = vmatprep.subr.mxu0 0.0
        %672 = vmatpush1.msra.mxu0 0.0
        %673 = vmatprep.subr.mxu0 0.0
        %674 = vmatpush1.msra.mxu0 0.0
        %675 = vmatprep.subr.mxu0 0.0
        %676 = vmatpush1.msra.mxu0 0.0
        %677 = vmatprep.subr.mxu0 0.0
        %678 = vmatpush1.msra.mxu0 0.0
        %679 = vmatprep.subr.mxu0 0.0
        %680 = vmatpush1.msra.mxu0 0.0
        %681 = vmatprep.mubr.f32.mxu0 0.0
        %v682 = vand.u32 %v403, 4294901760
        %v683 = vsub.f32 %v403, %v682
        %684 = vmatmul.mubr.f32.gmra.mrb[0].mxu0 %v683
        %v685 = vpop.f32.mrb[0].mxu0
        %v686 = vadd.f32 %v597, %v685
        %v687 = vpop.f32.mrb[0].mxu0
        %v688 = vadd.f32 %v599, %v687
        %689 = vdwg.mxu0
        %v690 = vand.u32 %v383, 4294901760
        %691 = vmatprep.subr.mxu0 %v690
        %v692 = vand.u32 %v382, 4294901760
        %693 = vmatpush1.msra.mxu0 %v692
        %v694 = vand.u32 %v385, 4294901760
        %695 = vmatprep.subr.mxu0 %v694
        %v696 = vand.u32 %v384, 4294901760
        %697 = vmatpush1.msra.mxu0 %v696
        %v698 = vand.u32 %v387, 4294901760
        %699 = vmatprep.subr.mxu0 %v698
        %v700 = vand.u32 %v386, 4294901760
        %701 = vmatpush1.msra.mxu0 %v700
        %v702 = vand.u32 %v389, 4294901760
        %703 = vmatprep.subr.mxu0 %v702
        %v704 = vand.u32 %v388, 4294901760
        %705 = vmatpush1.msra.mxu0 %v704
        %706 = vmatprep.subr.mxu0 0.0
        %707 = vmatpush1.msra.mxu0 0.0
        %708 = vmatprep.subr.mxu0 0.0
        %709 = vmatpush1.msra.mxu0 0.0
        %710 = vmatprep.subr.mxu0 0.0
        %711 = vmatpush1.msra.mxu0 0.0
        %712 = vmatprep.subr.mxu0 0.0
        %713 = vmatpush1.msra.mxu0 0.0
        %714 = vmatprep.subr.mxu0 0.0
        %715 = vmatpush1.msra.mxu0 0.0
        %716 = vmatprep.subr.mxu0 0.0
        %717 = vmatpush1.msra.mxu0 0.0
        %718 = vmatprep.subr.mxu0 0.0
        %719 = vmatpush1.msra.mxu0 0.0
        %720 = vmatprep.subr.mxu0 0.0
        %721 = vmatpush1.msra.mxu0 0.0
        %722 = vmatprep.subr.mxu0 0.0
        %723 = vmatpush1.msra.mxu0 0.0
        %724 = vmatprep.subr.mxu0 0.0
        %725 = vmatpush1.msra.mxu0 0.0
        %726 = vmatprep.subr.mxu0 0.0
        %727 = vmatpush1.msra.mxu0 0.0
        %728 = vmatprep.subr.mxu0 0.0
        %729 = vmatpush1.msra.mxu0 0.0
        %730 = vmatprep.subr.mxu0 0.0
        %731 = vmatpush1.msra.mxu0 0.0
        %732 = vmatprep.subr.mxu0 0.0
        %733 = vmatpush1.msra.mxu0 0.0
        %734 = vmatprep.subr.mxu0 0.0
        %735 = vmatpush1.msra.mxu0 0.0
        %736 = vmatprep.subr.mxu0 0.0
        %737 = vmatpush1.msra.mxu0 0.0
        %738 = vmatprep.subr.mxu0 0.0
        %739 = vmatpush1.msra.mxu0 0.0
        %740 = vmatprep.subr.mxu0 0.0
        %741 = vmatpush1.msra.mxu0 0.0
        %742 = vmatprep.subr.mxu0 0.0
        %743 = vmatpush1.msra.mxu0 0.0
        %744 = vmatprep.subr.mxu0 0.0
        %745 = vmatpush1.msra.mxu0 0.0
        %746 = vmatprep.subr.mxu0 0.0
        %747 = vmatpush1.msra.mxu0 0.0
        %748 = vmatprep.subr.mxu0 0.0
        %749 = vmatpush1.msra.mxu0 0.0
        %750 = vmatprep.subr.mxu0 0.0
        %751 = vmatpush1.msra.mxu0 0.0
        %752 = vmatprep.subr.mxu0 0.0
        %753 = vmatpush1.msra.mxu0 0.0
        %754 = vmatprep.subr.mxu0 0.0
        %755 = vmatpush1.msra.mxu0 0.0
        %756 = vmatprep.subr.mxu0 0.0
        %757 = vmatpush1.msra.mxu0 0.0
        %758 = vmatprep.subr.mxu0 0.0
        %759 = vmatpush1.msra.mxu0 0.0
        %760 = vmatprep.subr.mxu0 0.0
        %761 = vmatpush1.msra.mxu0 0.0
        %762 = vmatprep.mubr.f32.mxu0 0.0
        %v763 = vand.u32 %v403, 4294901760
        %v764 = vsub.f32 %v403, %v763
        %v765 = vand.u32 %v764, 4294901760
        %766 = vmatmul.mubr.f32.gmra.mrb[0].mxu0 %v765
        %v767 = vpop.f32.mrb[0].mxu0
        %v768 = vadd.f32 %v686, %v767
        %v769 = vpop.f32.mrb[0].mxu0
        %v770 = vadd.f32 %v688, %v769
        %771 = vdwg.mxu0
        %v772 = vand.u32 %v383, 4294901760
        %v773 = vsub.f32 %v383, %v772
        %v774 = vand.u32 %v773, 4294901760
        %775 = vmatprep.subr.mxu0 %v774
        %v776 = vand.u32 %v382, 4294901760
        %v777 = vsub.f32 %v382, %v776
        %v778 = vand.u32 %v777, 4294901760
        %779 = vmatpush1.msra.mxu0 %v778
        %v780 = vand.u32 %v385, 4294901760
        %v781 = vsub.f32 %v385, %v780
        %v782 = vand.u32 %v781, 4294901760
        %783 = vmatprep.subr.mxu0 %v782
        %v784 = vand.u32 %v384, 4294901760
        %v785 = vsub.f32 %v384, %v784
        %v786 = vand.u32 %v785, 4294901760
        %787 = vmatpush1.msra.mxu0 %v786
        %v788 = vand.u32 %v387, 4294901760
        %v789 = vsub.f32 %v387, %v788
        %v790 = vand.u32 %v789, 4294901760
        %791 = vmatprep.subr.mxu0 %v790
        %v792 = vand.u32 %v386, 4294901760
        %v793 = vsub.f32 %v386, %v792
        %v794 = vand.u32 %v793, 4294901760
        %795 = vmatpush1.msra.mxu0 %v794
        %v796 = vand.u32 %v389, 4294901760
        %v797 = vsub.f32 %v389, %v796
        %v798 = vand.u32 %v797, 4294901760
        %799 = vmatprep.subr.mxu0 %v798
        %v800 = vand.u32 %v388, 4294901760
        %v801 = vsub.f32 %v388, %v800
        %v802 = vand.u32 %v801, 4294901760
        %803 = vmatpush1.msra.mxu0 %v802
        %804 = vmatprep.subr.mxu0 0.0
        %805 = vmatpush1.msra.mxu0 0.0
        %806 = vmatprep.subr.mxu0 0.0
        %807 = vmatpush1.msra.mxu0 0.0
        %808 = vmatprep.subr.mxu0 0.0
        %809 = vmatpush1.msra.mxu0 0.0
        %810 = vmatprep.subr.mxu0 0.0
        %811 = vmatpush1.msra.mxu0 0.0
        %812 = vmatprep.subr.mxu0 0.0
        %813 = vmatpush1.msra.mxu0 0.0
        %814 = vmatprep.subr.mxu0 0.0
        %815 = vmatpush1.msra.mxu0 0.0
        %816 = vmatprep.subr.mxu0 0.0
        %817 = vmatpush1.msra.mxu0 0.0
        %818 = vmatprep.subr.mxu0 0.0
        %819 = vmatpush1.msra.mxu0 0.0
        %820 = vmatprep.subr.mxu0 0.0
        %821 = vmatpush1.msra.mxu0 0.0
        %822 = vmatprep.subr.mxu0 0.0
        %823 = vmatpush1.msra.mxu0 0.0
        %824 = vmatprep.subr.mxu0 0.0
        %825 = vmatpush1.msra.mxu0 0.0
        %826 = vmatprep.subr.mxu0 0.0
        %827 = vmatpush1.msra.mxu0 0.0
        %828 = vmatprep.subr.mxu0 0.0
        %829 = vmatpush1.msra.mxu0 0.0
        %830 = vmatprep.subr.mxu0 0.0
        %831 = vmatpush1.msra.mxu0 0.0
        %832 = vmatprep.subr.mxu0 0.0
        %833 = vmatpush1.msra.mxu0 0.0
        %834 = vmatprep.subr.mxu0 0.0
        %835 = vmatpush1.msra.mxu0 0.0
        %836 = vmatprep.subr.mxu0 0.0
        %837 = vmatpush1.msra.mxu0 0.0
        %838 = vmatprep.subr.mxu0 0.0
        %839 = vmatpush1.msra.mxu0 0.0
        %840 = vmatprep.subr.mxu0 0.0
        %841 = vmatpush1.msra.mxu0 0.0
        %842 = vmatprep.subr.mxu0 0.0
        %843 = vmatpush1.msra.mxu0 0.0
        %844 = vmatprep.subr.mxu0 0.0
        %845 = vmatpush1.msra.mxu0 0.0
        %846 = vmatprep.subr.mxu0 0.0
        %847 = vmatpush1.msra.mxu0 0.0
        %848 = vmatprep.subr.mxu0 0.0
        %849 = vmatpush1.msra.mxu0 0.0
        %850 = vmatprep.subr.mxu0 0.0
        %851 = vmatpush1.msra.mxu0 0.0
        %852 = vmatprep.subr.mxu0 0.0
        %853 = vmatpush1.msra.mxu0 0.0
        %854 = vmatprep.subr.mxu0 0.0
        %855 = vmatpush1.msra.mxu0 0.0
        %856 = vmatprep.subr.mxu0 0.0
        %857 = vmatpush1.msra.mxu0 0.0
        %858 = vmatprep.subr.mxu0 0.0
        %859 = vmatpush1.msra.mxu0 0.0
        %860 = vmatprep.mubr.f32.mxu0 0.0
        %v861 = vand.u32 %v403, 4294901760
        %862 = vmatmul.mubr.f32.gmra.mrb[0].mxu0 %v861
        %v863 = vpop.f32.mrb[0].mxu0
        %v864 = vadd.f32 %v768, %v863
        %v865 = vpop.f32.mrb[0].mxu0
        %v866 = vadd.f32 %v770, %v865
        %867 = vdwg.mxu0
        %v868 = vand.u32 %v383, 4294901760
        %869 = vmatprep.subr.mxu0 %v868
        %v870 = vand.u32 %v382, 4294901760
        %871 = vmatpush1.msra.mxu0 %v870
        %v872 = vand.u32 %v385, 4294901760
        %873 = vmatprep.subr.mxu0 %v872
        %v874 = vand.u32 %v384, 4294901760
        %875 = vmatpush1.msra.mxu0 %v874
        %v876 = vand.u32 %v387, 4294901760
        %877 = vmatprep.subr.mxu0 %v876
        %v878 = vand.u32 %v386, 4294901760
        %879 = vmatpush1.msra.mxu0 %v878
        %v880 = vand.u32 %v389, 4294901760
        %881 = vmatprep.subr.mxu0 %v880
        %v882 = vand.u32 %v388, 4294901760
        %883 = vmatpush1.msra.mxu0 %v882
        %884 = vmatprep.subr.mxu0 0.0
        %885 = vmatpush1.msra.mxu0 0.0
        %886 = vmatprep.subr.mxu0 0.0
        %887 = vmatpush1.msra.mxu0 0.0
        %888 = vmatprep.subr.mxu0 0.0
        %889 = vmatpush1.msra.mxu0 0.0
        %890 = vmatprep.subr.mxu0 0.0
        %891 = vmatpush1.msra.mxu0 0.0
        %892 = vmatprep.subr.mxu0 0.0
        %893 = vmatpush1.msra.mxu0 0.0
        %894 = vmatprep.subr.mxu0 0.0
        %895 = vmatpush1.msra.mxu0 0.0
        %896 = vmatprep.subr.mxu0 0.0
        %897 = vmatpush1.msra.mxu0 0.0
        %898 = vmatprep.subr.mxu0 0.0
        %899 = vmatpush1.msra.mxu0 0.0
        %900 = vmatprep.subr.mxu0 0.0
        %901 = vmatpush1.msra.mxu0 0.0
        %902 = vmatprep.subr.mxu0 0.0
        %903 = vmatpush1.msra.mxu0 0.0
        %904 = vmatprep.subr.mxu0 0.0
        %905 = vmatpush1.msra.mxu0 0.0
        %906 = vmatprep.subr.mxu0 0.0
        %907 = vmatpush1.msra.mxu0 0.0
        %908 = vmatprep.subr.mxu0 0.0
        %909 = vmatpush1.msra.mxu0 0.0
        %910 = vmatprep.subr.mxu0 0.0
        %911 = vmatpush1.msra.mxu0 0.0
        %912 = vmatprep.subr.mxu0 0.0
        %913 = vmatpush1.msra.mxu0 0.0
        %914 = vmatprep.subr.mxu0 0.0
        %915 = vmatpush1.msra.mxu0 0.0
        %916 = vmatprep.subr.mxu0 0.0
        %917 = vmatpush1.msra.mxu0 0.0
        %918 = vmatprep.subr.mxu0 0.0
        %919 = vmatpush1.msra.mxu0 0.0
        %920 = vmatprep.subr.mxu0 0.0
        %921 = vmatpush1.msra.mxu0 0.0
        %922 = vmatprep.subr.mxu0 0.0
        %923 = vmatpush1.msra.mxu0 0.0
        %924 = vmatprep.subr.mxu0 0.0
        %925 = vmatpush1.msra.mxu0 0.0
        %926 = vmatprep.subr.mxu0 0.0
        %927 = vmatpush1.msra.mxu0 0.0
        %928 = vmatprep.subr.mxu0 0.0
        %929 = vmatpush1.msra.mxu0 0.0
        %930 = vmatprep.subr.mxu0 0.0
        %931 = vmatpush1.msra.mxu0 0.0
        %932 = vmatprep.subr.mxu0 0.0
        %933 = vmatpush1.msra.mxu0 0.0
        %934 = vmatprep.subr.mxu0 0.0
        %935 = vmatpush1.msra.mxu0 0.0
        %936 = vmatprep.subr.mxu0 0.0
        %937 = vmatpush1.msra.mxu0 0.0
        %938 = vmatprep.subr.mxu0 0.0
        %939 = vmatpush1.msra.mxu0 0.0
        %940 = vmatprep.mubr.f32.mxu0 0.0
        %v941 = vand.u32 %v403, 4294901760
        %942 = vmatmul.mubr.f32.gmra.mrb[0].mxu0 %v941
        %v943 = vpop.f32.mrb[0].mxu0
        %v944 = vadd.f32 %v864, %v943
        %v945 = vpop.f32.mrb[0].mxu0
        %v946 = vadd.f32 %v866, %v945
        %947 = vdwg.mxu0
        %v948 = vmax.f32 %v944, 0.0
        %v949 = vmax.f32 %v946, 0.0
        %950 = vrot.lane.b32.xlu0 %v948, 68
        %v951 = vpop.permute.xlu0 %950
        %952 = vrot.lane.b32.xlu0 %v949, 68
        %v953 = vpop.permute.xlu0 %952
        %v954 = vlaneseq
        %v955 = vand.u32 %v954, 127
        %vm956 = vcmp.lt.s32.totalorder %v955, 68
        %v957 = vsel %vm956, %v951, %v953
        %v958 = vsel %vm956, %v953, %v951
        %v959 = vlaneseq
        %v960 = vshrl.u32 %v959, 7
        %v961 = vsub.s32 0, %v960
        %v962 = vrot.slane %v390, %v961
        %v963 = vlaneseq
        %v964 = vshrl.u32 %v963, 7
        %v965 = vsub.s32 0, %v964
        %v966 = vrot.slane %v391, %v965
        %v967 = vmul.f32 %v958, %v962
        %v968 = vmul.f32 %v957, %v966
        %969 = vrot.lane.b32.xlu0 %v948, 64
        %v970 = vpop.permute.xlu0 %969
        %971 = vrot.lane.b32.xlu0 %v949, 64
        %v972 = vpop.permute.xlu0 %971
        %vm973 = vcmp.lt.s32.totalorder %v955, 64
        %v974 = vsel %vm973, %v970, %v972
        %v975 = vsel %vm973, %v972, %v970
        %v976 = vlaneseq
        %v977 = vshrl.u32 %v976, 7
        %v978 = vsub.s32 1, %v977
        %v979 = vrot.slane %v390, %v978
        %v980 = vlaneseq
        %v981 = vshrl.u32 %v980, 7
        %v982 = vsub.s32 1, %v981
        %v983 = vrot.slane %v391, %v982
        %v984 = vmul.f32 %v975, %v979
        %v985 = vmul.f32 %v974, %v983
        %986 = vrot.lane.b32.xlu0 %v948, 60
        %v987 = vpop.permute.xlu0 %986
        %988 = vrot.lane.b32.xlu0 %v949, 60
        %v989 = vpop.permute.xlu0 %988
        %vm990 = vcmp.lt.s32.totalorder %v955, 60
        %v991 = vsel %vm990, %v987, %v989
        %v992 = vsel %vm990, %v989, %v987
        %v993 = vlaneseq
        %v994 = vshrl.u32 %v993, 7
        %v995 = vsub.s32 2, %v994
        %v996 = vrot.slane %v390, %v995
        %v997 = vlaneseq
        %v998 = vshrl.u32 %v997, 7
        %v999 = vsub.s32 2, %v998
        %v1000 = vrot.slane %v391, %v999
        %v1001 = vmul.f32 %v992, %v996
        %v1002 = vmul.f32 %v991, %v1000
        %1003 = vrot.lane.b32.xlu0 %v948, 4
        %v1004 = vpop.permute.xlu0 %1003
        %1005 = vrot.lane.b32.xlu0 %v949, 4
        %v1006 = vpop.permute.xlu0 %1005
        %vm1007 = vcmp.lt.s32.totalorder %v955, 4
        %v1008 = vsel %vm1007, %v1004, %v1006
        %v1009 = vsel %vm1007, %v1006, %v1004
        %v1010 = vlaneseq
        %v1011 = vshrl.u32 %v1010, 7
        %v1012 = vsub.s32 3, %v1011
        %v1013 = vrot.slane %v390, %v1012
        %v1014 = vlaneseq
        %v1015 = vshrl.u32 %v1014, 7
        %v1016 = vsub.s32 3, %v1015
        %v1017 = vrot.slane %v391, %v1016
        %v1018 = vmul.f32 %v1009, %v1013
        %v1019 = vmul.f32 %v1008, %v1017
        %1020 = vrot.lane.b32.xlu0 %v948, 124
        %v1021 = vpop.permute.xlu0 %1020
        %1022 = vrot.lane.b32.xlu0 %v949, 124
        %v1023 = vpop.permute.xlu0 %1022
        %vm1024 = vcmp.lt.s32.totalorder %v955, 124
        %v1025 = vsel %vm1024, %v1021, %v1023
        %v1026 = vsel %vm1024, %v1023, %v1021
        %v1027 = vlaneseq
        %v1028 = vshrl.u32 %v1027, 7
        %v1029 = vsub.s32 5, %v1028
        %v1030 = vrot.slane %v390, %v1029
        %v1031 = vlaneseq
        %v1032 = vshrl.u32 %v1031, 7
        %v1033 = vsub.s32 5, %v1032
        %v1034 = vrot.slane %v391, %v1033
        %v1035 = vmul.f32 %v1025, %v1030
        %v1036 = vmul.f32 %v1026, %v1034
        %v1037 = vlaneseq
        %v1038 = vshrl.u32 %v1037, 7
        %v1039 = vsub.s32 6, %v1038
        %v1040 = vrot.slane %v390, %v1039
        %v1041 = vlaneseq
        %v1042 = vshrl.u32 %v1041, 7
        %v1043 = vsub.s32 6, %v1042
        %v1044 = vrot.slane %v391, %v1043
        %v1045 = vmul.f32 %v957, %v1040
        %v1046 = vmul.f32 %v958, %v1044
        %v1047 = vlaneseq
        %v1048 = vshrl.u32 %v1047, 7
        %v1049 = vsub.s32 7, %v1048
        %v1050 = vrot.slane %v390, %v1049
        %v1051 = vlaneseq
        %v1052 = vshrl.u32 %v1051, 7
        %v1053 = vsub.s32 7, %v1052
        %v1054 = vrot.slane %v391, %v1053
        %v1055 = vmul.f32 %v974, %v1050
        %v1056 = vmul.f32 %v975, %v1054
        %v1057 = vlaneseq
        %v1058 = vshrl.u32 %v1057, 7
        %v1059 = vsub.s32 0, %v1058
        %v1060 = vrot.slane %v392, %v1059
        %v1061 = vlaneseq
        %v1062 = vshrl.u32 %v1061, 7
        %v1063 = vsub.s32 0, %v1062
        %v1064 = vrot.slane %v393, %v1063
        %v1065 = vmul.f32 %v991, %v1060
        %v1066 = vmul.f32 %v992, %v1064
        %v1069 = vrot.slane %v984, 6
        %v1070 = vrot.slane %v985, 6
        %v1075 = vrot.slane %v1001, 4
        %v1076 = vrot.slane %v1002, 4
        %v1081 = vrot.slane %v1018, 2
        %v1082 = vrot.slane %v1019, 2
        %v1087 = vrot.slane %v1035, 6
        %v1088 = vrot.slane %v1036, 6
        %v1093 = vrot.slane %v1045, 4
        %v1094 = vrot.slane %v1046, 4
        %v1099 = vrot.slane %v1055, 2
        %v1100 = vrot.slane %v1056, 2
        %vm1103 = vcmask 1041408
        %v1104 = vsel %vm1103, %v967, %v1069
        %v1105 = vsel %vm1103, %v968, %v1070
        %vm1106 = vcmask 1043456
        %v1107 = vsel %vm1106, %v1104, %v1075
        %v1108 = vsel %vm1106, %v1105, %v1076
        %vm1109 = vcmask 1045504
        %v1110 = vsel %vm1109, %v1107, %v1081
        %v1111 = vsel %vm1109, %v1108, %v1082
        %v1112 = vsel %vm1103, %v948, %v1087
        %v1113 = vsel %vm1103, %v949, %v1088
        %v1114 = vsel %vm1106, %v1112, %v1093
        %v1115 = vsel %vm1106, %v1113, %v1094
        %v1116 = vsel %vm1109, %v1114, %v1099
        %v1117 = vsel %vm1109, %v1115, %v1100
        %v1118 = vld [vmem:[%s3] sm:$0x3]
        %v1119 = vld [vmem:[%s4] sm:$0x3]
        %1121 = vset.pattern.permute.xlu0 0
        %1122 = vperm.xlu0 %1121, %v1119
        %v1123 = vpop.permute.xlu0 %1122
        %vm1125 = vcmask 146432
        %v1127 = vsel %vm1125, %v1118, 0
        %v1130 = vsel %vm1103, %v1065, 0
        %v1133 = vsel %vm1103, %v1066, 0
        %v1135 = vand.u32 %v1111, 4294901760
        %1136 = vmatprep.subr.mxu0 %v1135
        %v1137 = vand.u32 %v1110, 4294901760
        %1138 = vmatpush1.msra.mxu0 %v1137
        %v1139 = vand.u32 %v1117, 4294901760
        %1140 = vmatprep.subr.mxu0 %v1139
        %v1141 = vand.u32 %v1116, 4294901760
        %1142 = vmatpush1.msra.mxu0 %v1141
        %v1143 = vand.u32 %v1133, 4294901760
        %1144 = vmatprep.subr.mxu0 %v1143
        %v1145 = vand.u32 %v1130, 4294901760
        %1146 = vmatpush1.msra.mxu0 %v1145
        %1147 = vmatprep.subr.mxu0 0.0
        %1148 = vmatpush1.msra.mxu0 0.0
        %1149 = vmatprep.subr.mxu0 0.0
        %1150 = vmatpush1.msra.mxu0 0.0
        %1151 = vmatprep.subr.mxu0 0.0
        %1152 = vmatpush1.msra.mxu0 0.0
        %1153 = vmatprep.subr.mxu0 0.0
        %1154 = vmatpush1.msra.mxu0 0.0
        %1155 = vmatprep.subr.mxu0 0.0
        %1156 = vmatpush1.msra.mxu0 0.0
        %1157 = vmatprep.subr.mxu0 0.0
        %1158 = vmatpush1.msra.mxu0 0.0
        %1159 = vmatprep.subr.mxu0 0.0
        %1160 = vmatpush1.msra.mxu0 0.0
        %1161 = vmatprep.subr.mxu0 0.0
        %1162 = vmatpush1.msra.mxu0 0.0
        %1163 = vmatprep.subr.mxu0 0.0
        %1164 = vmatpush1.msra.mxu0 0.0
        %1165 = vmatprep.subr.mxu0 0.0
        %1166 = vmatpush1.msra.mxu0 0.0
        %1167 = vmatprep.subr.mxu0 0.0
        %1168 = vmatpush1.msra.mxu0 0.0
        %1169 = vmatprep.subr.mxu0 0.0
        %1170 = vmatpush1.msra.mxu0 0.0
        %1171 = vmatprep.subr.mxu0 0.0
        %1172 = vmatpush1.msra.mxu0 0.0
        %1173 = vmatprep.subr.mxu0 0.0
        %1174 = vmatpush1.msra.mxu0 0.0
        %1175 = vmatprep.subr.mxu0 0.0
        %1176 = vmatpush1.msra.mxu0 0.0
        %1177 = vmatprep.subr.mxu0 0.0
        %1178 = vmatpush1.msra.mxu0 0.0
        %1179 = vmatprep.subr.mxu0 0.0
        %1180 = vmatpush1.msra.mxu0 0.0
        %1181 = vmatprep.subr.mxu0 0.0
        %1182 = vmatpush1.msra.mxu0 0.0
        %1183 = vmatprep.subr.mxu0 0.0
        %1184 = vmatpush1.msra.mxu0 0.0
        %1185 = vmatprep.subr.mxu0 0.0
        %1186 = vmatpush1.msra.mxu0 0.0
        %1187 = vmatprep.subr.mxu0 0.0
        %1188 = vmatpush1.msra.mxu0 0.0
        %1189 = vmatprep.subr.mxu0 0.0
        %1190 = vmatpush1.msra.mxu0 0.0
        %1191 = vmatprep.subr.mxu0 0.0
        %1192 = vmatpush1.msra.mxu0 0.0
        %1193 = vmatprep.subr.mxu0 0.0
        %1194 = vmatpush1.msra.mxu0 0.0
        %1195 = vmatprep.subr.mxu0 0.0
        %1196 = vmatpush1.msra.mxu0 0.0
        %1197 = vmatprep.subr.mxu0 0.0
        %1198 = vmatpush1.msra.mxu0 0.0
        %1199 = vmatprep.subr.mxu0 0.0
        %1200 = vmatpush1.msra.mxu0 0.0
        %1201 = vmatprep.subr.mxu0 0.0
        %1202 = vmatpush1.msra.mxu0 0.0
        %1203 = vmatprep.subr.mxu0 0.0
        %1204 = vmatpush1.msra.mxu0 0.0
        %1205 = vmatprep.mubr.f32.mxu0 0.0
        %v1206 = vand.u32 %v1127, 4294901760
        %v1207 = vsub.f32 %v1127, %v1206
        %v1208 = vand.u32 %v1207, 4294901760
        %v1209 = vsub.f32 %v1207, %v1208
        %v1210 = vand.u32 %v1209, 4294901760
        %1211 = vmatmul.mubr.f32.gmra.mrb[0].mxu0 %v1210
        %v1212 = vpop.f32.mrb[0].mxu0
        %v1213 = vadd.f32 %v1123, %v1212
        %v1214 = vpop.f32.mrb[0].mxu0
        %v1215 = vadd.f32 %v1123, %v1214
        %1216 = vdwg.mxu0
        %v1217 = vand.u32 %v1111, 4294901760
        %v1218 = vsub.f32 %v1111, %v1217
        %v1219 = vand.u32 %v1218, 4294901760
        %v1220 = vsub.f32 %v1218, %v1219
        %v1221 = vand.u32 %v1220, 4294901760
        %1222 = vmatprep.subr.mxu0 %v1221
        %v1223 = vand.u32 %v1110, 4294901760
        %v1224 = vsub.f32 %v1110, %v1223
        %v1225 = vand.u32 %v1224, 4294901760
        %v1226 = vsub.f32 %v1224, %v1225
        %v1227 = vand.u32 %v1226, 4294901760
        %1228 = vmatpush1.msra.mxu0 %v1227
        %v1229 = vand.u32 %v1117, 4294901760
        %v1230 = vsub.f32 %v1117, %v1229
        %v1231 = vand.u32 %v1230, 4294901760
        %v1232 = vsub.f32 %v1230, %v1231
        %v1233 = vand.u32 %v1232, 4294901760
        %1234 = vmatprep.subr.mxu0 %v1233
        %v1235 = vand.u32 %v1116, 4294901760
        %v1236 = vsub.f32 %v1116, %v1235
        %v1237 = vand.u32 %v1236, 4294901760
        %v1238 = vsub.f32 %v1236, %v1237
        %v1239 = vand.u32 %v1238, 4294901760
        %1240 = vmatpush1.msra.mxu0 %v1239
        %v1241 = vand.u32 %v1133, 4294901760
        %v1242 = vsub.f32 %v1133, %v1241
        %v1243 = vand.u32 %v1242, 4294901760
        %v1244 = vsub.f32 %v1242, %v1243
        %v1245 = vand.u32 %v1244, 4294901760
        %1246 = vmatprep.subr.mxu0 %v1245
        %v1247 = vand.u32 %v1130, 4294901760
        %v1248 = vsub.f32 %v1130, %v1247
        %v1249 = vand.u32 %v1248, 4294901760
        %v1250 = vsub.f32 %v1248, %v1249
        %v1251 = vand.u32 %v1250, 4294901760
        %1252 = vmatpush1.msra.mxu0 %v1251
        %1253 = vmatprep.subr.mxu0 0.0
        %1254 = vmatpush1.msra.mxu0 0.0
        %1255 = vmatprep.subr.mxu0 0.0
        %1256 = vmatpush1.msra.mxu0 0.0
        %1257 = vmatprep.subr.mxu0 0.0
        %1258 = vmatpush1.msra.mxu0 0.0
        %1259 = vmatprep.subr.mxu0 0.0
        %1260 = vmatpush1.msra.mxu0 0.0
        %1261 = vmatprep.subr.mxu0 0.0
        %1262 = vmatpush1.msra.mxu0 0.0
        %1263 = vmatprep.subr.mxu0 0.0
        %1264 = vmatpush1.msra.mxu0 0.0
        %1265 = vmatprep.subr.mxu0 0.0
        %1266 = vmatpush1.msra.mxu0 0.0
        %1267 = vmatprep.subr.mxu0 0.0
        %1268 = vmatpush1.msra.mxu0 0.0
        %1269 = vmatprep.subr.mxu0 0.0
        %1270 = vmatpush1.msra.mxu0 0.0
        %1271 = vmatprep.subr.mxu0 0.0
        %1272 = vmatpush1.msra.mxu0 0.0
        %1273 = vmatprep.subr.mxu0 0.0
        %1274 = vmatpush1.msra.mxu0 0.0
        %1275 = vmatprep.subr.mxu0 0.0
        %1276 = vmatpush1.msra.mxu0 0.0
        %1277 = vmatprep.subr.mxu0 0.0
        %1278 = vmatpush1.msra.mxu0 0.0
        %1279 = vmatprep.subr.mxu0 0.0
        %1280 = vmatpush1.msra.mxu0 0.0
        %1281 = vmatprep.subr.mxu0 0.0
        %1282 = vmatpush1.msra.mxu0 0.0
        %1283 = vmatprep.subr.mxu0 0.0
        %1284 = vmatpush1.msra.mxu0 0.0
        %1285 = vmatprep.subr.mxu0 0.0
        %1286 = vmatpush1.msra.mxu0 0.0
        %1287 = vmatprep.subr.mxu0 0.0
        %1288 = vmatpush1.msra.mxu0 0.0
        %1289 = vmatprep.subr.mxu0 0.0
        %1290 = vmatpush1.msra.mxu0 0.0
        %1291 = vmatprep.subr.mxu0 0.0
        %1292 = vmatpush1.msra.mxu0 0.0
        %1293 = vmatprep.subr.mxu0 0.0
        %1294 = vmatpush1.msra.mxu0 0.0
        %1295 = vmatprep.subr.mxu0 0.0
        %1296 = vmatpush1.msra.mxu0 0.0
        %1297 = vmatprep.subr.mxu0 0.0
        %1298 = vmatpush1.msra.mxu0 0.0
        %1299 = vmatprep.subr.mxu0 0.0
        %1300 = vmatpush1.msra.mxu0 0.0
        %1301 = vmatprep.subr.mxu0 0.0
        %1302 = vmatpush1.msra.mxu0 0.0
        %1303 = vmatprep.subr.mxu0 0.0
        %1304 = vmatpush1.msra.mxu0 0.0
        %1305 = vmatprep.subr.mxu0 0.0
        %1306 = vmatpush1.msra.mxu0 0.0
        %1307 = vmatprep.subr.mxu0 0.0
        %1308 = vmatpush1.msra.mxu0 0.0
        %1309 = vmatprep.subr.mxu0 0.0
        %1310 = vmatpush1.msra.mxu0 0.0
        %1311 = vmatprep.mubr.f32.mxu0 0.0
        %v1312 = vand.u32 %v1127, 4294901760
        %1313 = vmatmul.mubr.f32.gmra.mrb[0].mxu0 %v1312
        %v1314 = vpop.f32.mrb[0].mxu0
        %v1315 = vadd.f32 %v1213, %v1314
        %v1316 = vpop.f32.mrb[0].mxu0
        %v1317 = vadd.f32 %v1215, %v1316
        %1318 = vdwg.mxu0
        %v1319 = vand.u32 %v1111, 4294901760
        %v1320 = vsub.f32 %v1111, %v1319
        %1321 = vmatprep.subr.mxu0 %v1320
        %v1322 = vand.u32 %v1110, 4294901760
        %v1323 = vsub.f32 %v1110, %v1322
        %1324 = vmatpush1.msra.mxu0 %v1323
        %v1325 = vand.u32 %v1117, 4294901760
        %v1326 = vsub.f32 %v1117, %v1325
        %1327 = vmatprep.subr.mxu0 %v1326
        %v1328 = vand.u32 %v1116, 4294901760
        %v1329 = vsub.f32 %v1116, %v1328
        %1330 = vmatpush1.msra.mxu0 %v1329
        %v1331 = vand.u32 %v1133, 4294901760
        %v1332 = vsub.f32 %v1133, %v1331
        %1333 = vmatprep.subr.mxu0 %v1332
        %v1334 = vand.u32 %v1130, 4294901760
        %v1335 = vsub.f32 %v1130, %v1334
        %1336 = vmatpush1.msra.mxu0 %v1335
        %1337 = vmatprep.subr.mxu0 0.0
        %1338 = vmatpush1.msra.mxu0 0.0
        %1339 = vmatprep.subr.mxu0 0.0
        %1340 = vmatpush1.msra.mxu0 0.0
        %1341 = vmatprep.subr.mxu0 0.0
        %1342 = vmatpush1.msra.mxu0 0.0
        %1343 = vmatprep.subr.mxu0 0.0
        %1344 = vmatpush1.msra.mxu0 0.0
        %1345 = vmatprep.subr.mxu0 0.0
        %1346 = vmatpush1.msra.mxu0 0.0
        %1347 = vmatprep.subr.mxu0 0.0
        %1348 = vmatpush1.msra.mxu0 0.0
        %1349 = vmatprep.subr.mxu0 0.0
        %1350 = vmatpush1.msra.mxu0 0.0
        %1351 = vmatprep.subr.mxu0 0.0
        %1352 = vmatpush1.msra.mxu0 0.0
        %1353 = vmatprep.subr.mxu0 0.0
        %1354 = vmatpush1.msra.mxu0 0.0
        %1355 = vmatprep.subr.mxu0 0.0
        %1356 = vmatpush1.msra.mxu0 0.0
        %1357 = vmatprep.subr.mxu0 0.0
        %1358 = vmatpush1.msra.mxu0 0.0
        %1359 = vmatprep.subr.mxu0 0.0
        %1360 = vmatpush1.msra.mxu0 0.0
        %1361 = vmatprep.subr.mxu0 0.0
        %1362 = vmatpush1.msra.mxu0 0.0
        %1363 = vmatprep.subr.mxu0 0.0
        %1364 = vmatpush1.msra.mxu0 0.0
        %1365 = vmatprep.subr.mxu0 0.0
        %1366 = vmatpush1.msra.mxu0 0.0
        %1367 = vmatprep.subr.mxu0 0.0
        %1368 = vmatpush1.msra.mxu0 0.0
        %1369 = vmatprep.subr.mxu0 0.0
        %1370 = vmatpush1.msra.mxu0 0.0
        %1371 = vmatprep.subr.mxu0 0.0
        %1372 = vmatpush1.msra.mxu0 0.0
        %1373 = vmatprep.subr.mxu0 0.0
        %1374 = vmatpush1.msra.mxu0 0.0
        %1375 = vmatprep.subr.mxu0 0.0
        %1376 = vmatpush1.msra.mxu0 0.0
        %1377 = vmatprep.subr.mxu0 0.0
        %1378 = vmatpush1.msra.mxu0 0.0
        %1379 = vmatprep.subr.mxu0 0.0
        %1380 = vmatpush1.msra.mxu0 0.0
        %1381 = vmatprep.subr.mxu0 0.0
        %1382 = vmatpush1.msra.mxu0 0.0
        %1383 = vmatprep.subr.mxu0 0.0
        %1384 = vmatpush1.msra.mxu0 0.0
        %1385 = vmatprep.subr.mxu0 0.0
        %1386 = vmatpush1.msra.mxu0 0.0
        %1387 = vmatprep.subr.mxu0 0.0
        %1388 = vmatpush1.msra.mxu0 0.0
        %1389 = vmatprep.subr.mxu0 0.0
        %1390 = vmatpush1.msra.mxu0 0.0
        %1391 = vmatprep.subr.mxu0 0.0
        %1392 = vmatpush1.msra.mxu0 0.0
        %1393 = vmatprep.subr.mxu0 0.0
        %1394 = vmatpush1.msra.mxu0 0.0
        %1395 = vmatprep.mubr.f32.mxu0 0.0
        %v1396 = vand.u32 %v1127, 4294901760
        %v1397 = vsub.f32 %v1127, %v1396
        %1398 = vmatmul.mubr.f32.gmra.mrb[0].mxu0 %v1397
        %v1399 = vpop.f32.mrb[0].mxu0
        %v1400 = vadd.f32 %v1315, %v1399
        %v1401 = vpop.f32.mrb[0].mxu0
        %v1402 = vadd.f32 %v1317, %v1401
        %1403 = vdwg.mxu0
        %v1404 = vand.u32 %v1111, 4294901760
        %1405 = vmatprep.subr.mxu0 %v1404
        %v1406 = vand.u32 %v1110, 4294901760
        %1407 = vmatpush1.msra.mxu0 %v1406
        %v1408 = vand.u32 %v1117, 4294901760
        %1409 = vmatprep.subr.mxu0 %v1408
        %v1410 = vand.u32 %v1116, 4294901760
        %1411 = vmatpush1.msra.mxu0 %v1410
        %v1412 = vand.u32 %v1133, 4294901760
        %1413 = vmatprep.subr.mxu0 %v1412
        %v1414 = vand.u32 %v1130, 4294901760
        %1415 = vmatpush1.msra.mxu0 %v1414
        %1416 = vmatprep.subr.mxu0 0.0
        %1417 = vmatpush1.msra.mxu0 0.0
        %1418 = vmatprep.subr.mxu0 0.0
        %1419 = vmatpush1.msra.mxu0 0.0
        %1420 = vmatprep.subr.mxu0 0.0
        %1421 = vmatpush1.msra.mxu0 0.0
        %1422 = vmatprep.subr.mxu0 0.0
        %1423 = vmatpush1.msra.mxu0 0.0
        %1424 = vmatprep.subr.mxu0 0.0
        %1425 = vmatpush1.msra.mxu0 0.0
        %1426 = vmatprep.subr.mxu0 0.0
        %1427 = vmatpush1.msra.mxu0 0.0
        %1428 = vmatprep.subr.mxu0 0.0
        %1429 = vmatpush1.msra.mxu0 0.0
        %1430 = vmatprep.subr.mxu0 0.0
        %1431 = vmatpush1.msra.mxu0 0.0
        %1432 = vmatprep.subr.mxu0 0.0
        %1433 = vmatpush1.msra.mxu0 0.0
        %1434 = vmatprep.subr.mxu0 0.0
        %1435 = vmatpush1.msra.mxu0 0.0
        %1436 = vmatprep.subr.mxu0 0.0
        %1437 = vmatpush1.msra.mxu0 0.0
        %1438 = vmatprep.subr.mxu0 0.0
        %1439 = vmatpush1.msra.mxu0 0.0
        %1440 = vmatprep.subr.mxu0 0.0
        %1441 = vmatpush1.msra.mxu0 0.0
        %1442 = vmatprep.subr.mxu0 0.0
        %1443 = vmatpush1.msra.mxu0 0.0
        %1444 = vmatprep.subr.mxu0 0.0
        %1445 = vmatpush1.msra.mxu0 0.0
        %1446 = vmatprep.subr.mxu0 0.0
        %1447 = vmatpush1.msra.mxu0 0.0
        %1448 = vmatprep.subr.mxu0 0.0
        %1449 = vmatpush1.msra.mxu0 0.0
        %1450 = vmatprep.subr.mxu0 0.0
        %1451 = vmatpush1.msra.mxu0 0.0
        %1452 = vmatprep.subr.mxu0 0.0
        %1453 = vmatpush1.msra.mxu0 0.0
        %1454 = vmatprep.subr.mxu0 0.0
        %1455 = vmatpush1.msra.mxu0 0.0
        %1456 = vmatprep.subr.mxu0 0.0
        %1457 = vmatpush1.msra.mxu0 0.0
        %1458 = vmatprep.subr.mxu0 0.0
        %1459 = vmatpush1.msra.mxu0 0.0
        %1460 = vmatprep.subr.mxu0 0.0
        %1461 = vmatpush1.msra.mxu0 0.0
        %1462 = vmatprep.subr.mxu0 0.0
        %1463 = vmatpush1.msra.mxu0 0.0
        %1464 = vmatprep.subr.mxu0 0.0
        %1465 = vmatpush1.msra.mxu0 0.0
        %1466 = vmatprep.subr.mxu0 0.0
        %1467 = vmatpush1.msra.mxu0 0.0
        %1468 = vmatprep.subr.mxu0 0.0
        %1469 = vmatpush1.msra.mxu0 0.0
        %1470 = vmatprep.subr.mxu0 0.0
        %1471 = vmatpush1.msra.mxu0 0.0
        %1472 = vmatprep.subr.mxu0 0.0
        %1473 = vmatpush1.msra.mxu0 0.0
        %1474 = vmatprep.mubr.f32.mxu0 0.0
        %v1475 = vand.u32 %v1127, 4294901760
        %v1476 = vsub.f32 %v1127, %v1475
        %v1477 = vand.u32 %v1476, 4294901760
        %1478 = vmatmul.mubr.f32.gmra.mrb[0].mxu0 %v1477
        %v1479 = vpop.f32.mrb[0].mxu0
        %v1480 = vadd.f32 %v1400, %v1479
        %v1481 = vpop.f32.mrb[0].mxu0
        %v1482 = vadd.f32 %v1402, %v1481
        %1483 = vdwg.mxu0
        %v1484 = vand.u32 %v1111, 4294901760
        %v1485 = vsub.f32 %v1111, %v1484
        %v1486 = vand.u32 %v1485, 4294901760
        %1487 = vmatprep.subr.mxu0 %v1486
        %v1488 = vand.u32 %v1110, 4294901760
        %v1489 = vsub.f32 %v1110, %v1488
        %v1490 = vand.u32 %v1489, 4294901760
        %1491 = vmatpush1.msra.mxu0 %v1490
        %v1492 = vand.u32 %v1117, 4294901760
        %v1493 = vsub.f32 %v1117, %v1492
        %v1494 = vand.u32 %v1493, 4294901760
        %1495 = vmatprep.subr.mxu0 %v1494
        %v1496 = vand.u32 %v1116, 4294901760
        %v1497 = vsub.f32 %v1116, %v1496
        %v1498 = vand.u32 %v1497, 4294901760
        %1499 = vmatpush1.msra.mxu0 %v1498
        %v1500 = vand.u32 %v1133, 4294901760
        %v1501 = vsub.f32 %v1133, %v1500
        %v1502 = vand.u32 %v1501, 4294901760
        %1503 = vmatprep.subr.mxu0 %v1502
        %v1504 = vand.u32 %v1130, 4294901760
        %v1505 = vsub.f32 %v1130, %v1504
        %v1506 = vand.u32 %v1505, 4294901760
        %1507 = vmatpush1.msra.mxu0 %v1506
        %1508 = vmatprep.subr.mxu0 0.0
        %1509 = vmatpush1.msra.mxu0 0.0
        %1510 = vmatprep.subr.mxu0 0.0
        %1511 = vmatpush1.msra.mxu0 0.0
        %1512 = vmatprep.subr.mxu0 0.0
        %1513 = vmatpush1.msra.mxu0 0.0
        %1514 = vmatprep.subr.mxu0 0.0
        %1515 = vmatpush1.msra.mxu0 0.0
        %1516 = vmatprep.subr.mxu0 0.0
        %1517 = vmatpush1.msra.mxu0 0.0
        %1518 = vmatprep.subr.mxu0 0.0
        %1519 = vmatpush1.msra.mxu0 0.0
        %1520 = vmatprep.subr.mxu0 0.0
        %1521 = vmatpush1.msra.mxu0 0.0
        %1522 = vmatprep.subr.mxu0 0.0
        %1523 = vmatpush1.msra.mxu0 0.0
        %1524 = vmatprep.subr.mxu0 0.0
        %1525 = vmatpush1.msra.mxu0 0.0
        %1526 = vmatprep.subr.mxu0 0.0
        %1527 = vmatpush1.msra.mxu0 0.0
        %1528 = vmatprep.subr.mxu0 0.0
        %1529 = vmatpush1.msra.mxu0 0.0
        %1530 = vmatprep.subr.mxu0 0.0
        %1531 = vmatpush1.msra.mxu0 0.0
        %1532 = vmatprep.subr.mxu0 0.0
        %1533 = vmatpush1.msra.mxu0 0.0
        %1534 = vmatprep.subr.mxu0 0.0
        %1535 = vmatpush1.msra.mxu0 0.0
        %1536 = vmatprep.subr.mxu0 0.0
        %1537 = vmatpush1.msra.mxu0 0.0
        %1538 = vmatprep.subr.mxu0 0.0
        %1539 = vmatpush1.msra.mxu0 0.0
        %1540 = vmatprep.subr.mxu0 0.0
        %1541 = vmatpush1.msra.mxu0 0.0
        %1542 = vmatprep.subr.mxu0 0.0
        %1543 = vmatpush1.msra.mxu0 0.0
        %1544 = vmatprep.subr.mxu0 0.0
        %1545 = vmatpush1.msra.mxu0 0.0
        %1546 = vmatprep.subr.mxu0 0.0
        %1547 = vmatpush1.msra.mxu0 0.0
        %1548 = vmatprep.subr.mxu0 0.0
        %1549 = vmatpush1.msra.mxu0 0.0
        %1550 = vmatprep.subr.mxu0 0.0
        %1551 = vmatpush1.msra.mxu0 0.0
        %1552 = vmatprep.subr.mxu0 0.0
        %1553 = vmatpush1.msra.mxu0 0.0
        %1554 = vmatprep.subr.mxu0 0.0
        %1555 = vmatpush1.msra.mxu0 0.0
        %1556 = vmatprep.subr.mxu0 0.0
        %1557 = vmatpush1.msra.mxu0 0.0
        %1558 = vmatprep.subr.mxu0 0.0
        %1559 = vmatpush1.msra.mxu0 0.0
        %1560 = vmatprep.subr.mxu0 0.0
        %1561 = vmatpush1.msra.mxu0 0.0
        %1562 = vmatprep.subr.mxu0 0.0
        %1563 = vmatpush1.msra.mxu0 0.0
        %1564 = vmatprep.subr.mxu0 0.0
        %1565 = vmatpush1.msra.mxu0 0.0
        %1566 = vmatprep.mubr.f32.mxu0 0.0
        %v1567 = vand.u32 %v1127, 4294901760
        %1568 = vmatmul.mubr.f32.gmra.mrb[0].mxu0 %v1567
        %v1569 = vpop.f32.mrb[0].mxu0
        %v1570 = vadd.f32 %v1480, %v1569
        %v1571 = vpop.f32.mrb[0].mxu0
        %v1572 = vadd.f32 %v1482, %v1571
        %1573 = vdwg.mxu0
        %v1574 = vand.u32 %v1111, 4294901760
        %1575 = vmatprep.subr.mxu0 %v1574
        %v1576 = vand.u32 %v1110, 4294901760
        %1577 = vmatpush1.msra.mxu0 %v1576
        %v1578 = vand.u32 %v1117, 4294901760
        %1579 = vmatprep.subr.mxu0 %v1578
        %v1580 = vand.u32 %v1116, 4294901760
        %1581 = vmatpush1.msra.mxu0 %v1580
        %v1582 = vand.u32 %v1133, 4294901760
        %1583 = vmatprep.subr.mxu0 %v1582
        %v1584 = vand.u32 %v1130, 4294901760
        %1585 = vmatpush1.msra.mxu0 %v1584
        %1586 = vmatprep.subr.mxu0 0.0
        %1587 = vmatpush1.msra.mxu0 0.0
        %1588 = vmatprep.subr.mxu0 0.0
        %1589 = vmatpush1.msra.mxu0 0.0
        %1590 = vmatprep.subr.mxu0 0.0
        %1591 = vmatpush1.msra.mxu0 0.0
        %1592 = vmatprep.subr.mxu0 0.0
        %1593 = vmatpush1.msra.mxu0 0.0
        %1594 = vmatprep.subr.mxu0 0.0
        %1595 = vmatpush1.msra.mxu0 0.0
        %1596 = vmatprep.subr.mxu0 0.0
        %1597 = vmatpush1.msra.mxu0 0.0
        %1598 = vmatprep.subr.mxu0 0.0
        %1599 = vmatpush1.msra.mxu0 0.0
        %1600 = vmatprep.subr.mxu0 0.0
        %1601 = vmatpush1.msra.mxu0 0.0
        %1602 = vmatprep.subr.mxu0 0.0
        %1603 = vmatpush1.msra.mxu0 0.0
        %1604 = vmatprep.subr.mxu0 0.0
        %1605 = vmatpush1.msra.mxu0 0.0
        %1606 = vmatprep.subr.mxu0 0.0
        %1607 = vmatpush1.msra.mxu0 0.0
        %1608 = vmatprep.subr.mxu0 0.0
        %1609 = vmatpush1.msra.mxu0 0.0
        %1610 = vmatprep.subr.mxu0 0.0
        %1611 = vmatpush1.msra.mxu0 0.0
        %1612 = vmatprep.subr.mxu0 0.0
        %1613 = vmatpush1.msra.mxu0 0.0
        %1614 = vmatprep.subr.mxu0 0.0
        %1615 = vmatpush1.msra.mxu0 0.0
        %1616 = vmatprep.subr.mxu0 0.0
        %1617 = vmatpush1.msra.mxu0 0.0
        %1618 = vmatprep.subr.mxu0 0.0
        %1619 = vmatpush1.msra.mxu0 0.0
        %1620 = vmatprep.subr.mxu0 0.0
        %1621 = vmatpush1.msra.mxu0 0.0
        %1622 = vmatprep.subr.mxu0 0.0
        %1623 = vmatpush1.msra.mxu0 0.0
        %1624 = vmatprep.subr.mxu0 0.0
        %1625 = vmatpush1.msra.mxu0 0.0
        %1626 = vmatprep.subr.mxu0 0.0
        %1627 = vmatpush1.msra.mxu0 0.0
        %1628 = vmatprep.subr.mxu0 0.0
        %1629 = vmatpush1.msra.mxu0 0.0
        %1630 = vmatprep.subr.mxu0 0.0
        %1631 = vmatpush1.msra.mxu0 0.0
        %1632 = vmatprep.subr.mxu0 0.0
        %1633 = vmatpush1.msra.mxu0 0.0
        %1634 = vmatprep.subr.mxu0 0.0
        %1635 = vmatpush1.msra.mxu0 0.0
        %1636 = vmatprep.subr.mxu0 0.0
        %1637 = vmatpush1.msra.mxu0 0.0
        %1638 = vmatprep.subr.mxu0 0.0
        %1639 = vmatpush1.msra.mxu0 0.0
        %1640 = vmatprep.subr.mxu0 0.0
        %1641 = vmatpush1.msra.mxu0 0.0
        %1642 = vmatprep.subr.mxu0 0.0
        %1643 = vmatpush1.msra.mxu0 0.0
        %1644 = vmatprep.mubr.f32.mxu0 0.0
        %v1645 = vand.u32 %v1127, 4294901760
        %1646 = vmatmul.mubr.f32.gmra.mrb[0].mxu0 %v1645
        %v1647 = vpop.f32.mrb[0].mxu0
        %v1648 = vadd.f32 %v1570, %v1647
        %v1649 = vpop.f32.mrb[0].mxu0
        %v1650 = vadd.f32 %v1572, %v1649
        %1651 = vdwg.mxu0
        %v1652 = vmax.f32 %v1648, 0.0
        %v1653 = vmax.f32 %v1650, 0.0
        %1654 = vrot.lane.b32.xlu0 %v1652, 68
        %v1655 = vpop.permute.xlu0 %1654
        %1656 = vrot.lane.b32.xlu0 %v1653, 68
        %v1657 = vpop.permute.xlu0 %1656
        %v1658 = vsel %vm956, %v1655, %v1657
        %v1659 = vsel %vm956, %v1657, %v1655
        %v1660 = vmul.f32 %v1659, %v962
        %v1661 = vmul.f32 %v1658, %v966
        %1662 = vrot.lane.b32.xlu0 %v1652, 64
        %v1663 = vpop.permute.xlu0 %1662
        %1664 = vrot.lane.b32.xlu0 %v1653, 64
        %v1665 = vpop.permute.xlu0 %1664
        %v1666 = vsel %vm973, %v1663, %v1665
        %v1667 = vsel %vm973, %v1665, %v1663
        %v1668 = vmul.f32 %v1667, %v979
        %v1669 = vmul.f32 %v1666, %v983
        %1670 = vrot.lane.b32.xlu0 %v1652, 60
        %v1671 = vpop.permute.xlu0 %1670
        %1672 = vrot.lane.b32.xlu0 %v1653, 60
        %v1673 = vpop.permute.xlu0 %1672
        %v1674 = vsel %vm990, %v1671, %v1673
        %v1675 = vsel %vm990, %v1673, %v1671
        %v1676 = vmul.f32 %v1675, %v996
        %v1677 = vmul.f32 %v1674, %v1000
        %1678 = vrot.lane.b32.xlu0 %v1652, 4
        %v1679 = vpop.permute.xlu0 %1678
        %1680 = vrot.lane.b32.xlu0 %v1653, 4
        %v1681 = vpop.permute.xlu0 %1680
        %v1682 = vsel %vm1007, %v1679, %v1681
        %v1683 = vsel %vm1007, %v1681, %v1679
        %v1684 = vmul.f32 %v1683, %v1013
        %v1685 = vmul.f32 %v1682, %v1017
        %1686 = vrot.lane.b32.xlu0 %v1652, 124
        %v1687 = vpop.permute.xlu0 %1686
        %1688 = vrot.lane.b32.xlu0 %v1653, 124
        %v1689 = vpop.permute.xlu0 %1688
        %v1690 = vsel %vm1024, %v1687, %v1689
        %v1691 = vsel %vm1024, %v1689, %v1687
        %v1692 = vmul.f32 %v1690, %v1030
        %v1693 = vmul.f32 %v1691, %v1034
        %v1694 = vmul.f32 %v1658, %v1040
        %v1695 = vmul.f32 %v1659, %v1044
        %v1696 = vmul.f32 %v1666, %v1050
        %v1697 = vmul.f32 %v1667, %v1054
        %v1698 = vmul.f32 %v1674, %v1060
        %v1699 = vmul.f32 %v1675, %v1064
        %v1702 = vrot.slane %v1668, 6
        %v1703 = vrot.slane %v1669, 6
        %v1708 = vrot.slane %v1676, 4
        %v1709 = vrot.slane %v1677, 4
        %v1714 = vrot.slane %v1684, 2
        %v1715 = vrot.slane %v1685, 2
        %v1720 = vrot.slane %v1692, 6
        %v1721 = vrot.slane %v1693, 6
        %v1726 = vrot.slane %v1694, 4
        %v1727 = vrot.slane %v1695, 4
        %v1732 = vrot.slane %v1696, 2
        %v1733 = vrot.slane %v1697, 2
        %v1736 = vsel %vm1103, %v1660, %v1702
        %v1737 = vsel %vm1103, %v1661, %v1703
        %v1738 = vsel %vm1106, %v1736, %v1708
        %v1739 = vsel %vm1106, %v1737, %v1709
        %v1740 = vsel %vm1109, %v1738, %v1714
        %v1741 = vsel %vm1109, %v1739, %v1715
        %v1742 = vsel %vm1103, %v1652, %v1720
        %v1743 = vsel %vm1103, %v1653, %v1721
        %v1744 = vsel %vm1106, %v1742, %v1726
        %v1745 = vsel %vm1106, %v1743, %v1727
        %v1746 = vsel %vm1109, %v1744, %v1732
        %v1747 = vsel %vm1109, %v1745, %v1733
        %v1748 = vld [vmem:[%s5] sm:$0x3]
        %v1749 = vld [vmem:[%s6] sm:$0x3]
        %1751 = vset.pattern.permute.xlu0 0
        %1752 = vperm.xlu0 %1751, %v1749
        %v1753 = vpop.permute.xlu0 %1752
        %v1756 = vsel %vm1125, %v1748, 0
        %v1759 = vsel %vm1103, %v1698, 0
        %v1762 = vsel %vm1103, %v1699, 0
        %v1764 = vand.u32 %v1741, 4294901760
        %1765 = vmatprep.subr.mxu0 %v1764
        %v1766 = vand.u32 %v1740, 4294901760
        %1767 = vmatpush1.msra.mxu0 %v1766
        %v1768 = vand.u32 %v1747, 4294901760
        %1769 = vmatprep.subr.mxu0 %v1768
        %v1770 = vand.u32 %v1746, 4294901760
        %1771 = vmatpush1.msra.mxu0 %v1770
        %v1772 = vand.u32 %v1762, 4294901760
        %1773 = vmatprep.subr.mxu0 %v1772
        %v1774 = vand.u32 %v1759, 4294901760
        %1775 = vmatpush1.msra.mxu0 %v1774
        %1776 = vmatprep.subr.mxu0 0.0
        %1777 = vmatpush1.msra.mxu0 0.0
        %1778 = vmatprep.subr.mxu0 0.0
        %1779 = vmatpush1.msra.mxu0 0.0
        %1780 = vmatprep.subr.mxu0 0.0
        %1781 = vmatpush1.msra.mxu0 0.0
        %1782 = vmatprep.subr.mxu0 0.0
        %1783 = vmatpush1.msra.mxu0 0.0
        %1784 = vmatprep.subr.mxu0 0.0
        %1785 = vmatpush1.msra.mxu0 0.0
        %1786 = vmatprep.subr.mxu0 0.0
        %1787 = vmatpush1.msra.mxu0 0.0
        %1788 = vmatprep.subr.mxu0 0.0
        %1789 = vmatpush1.msra.mxu0 0.0
        %1790 = vmatprep.subr.mxu0 0.0
        %1791 = vmatpush1.msra.mxu0 0.0
        %1792 = vmatprep.subr.mxu0 0.0
        %1793 = vmatpush1.msra.mxu0 0.0
        %1794 = vmatprep.subr.mxu0 0.0
        %1795 = vmatpush1.msra.mxu0 0.0
        %1796 = vmatprep.subr.mxu0 0.0
        %1797 = vmatpush1.msra.mxu0 0.0
        %1798 = vmatprep.subr.mxu0 0.0
        %1799 = vmatpush1.msra.mxu0 0.0
        %1800 = vmatprep.subr.mxu0 0.0
        %1801 = vmatpush1.msra.mxu0 0.0
        %1802 = vmatprep.subr.mxu0 0.0
        %1803 = vmatpush1.msra.mxu0 0.0
        %1804 = vmatprep.subr.mxu0 0.0
        %1805 = vmatpush1.msra.mxu0 0.0
        %1806 = vmatprep.subr.mxu0 0.0
        %1807 = vmatpush1.msra.mxu0 0.0
        %1808 = vmatprep.subr.mxu0 0.0
        %1809 = vmatpush1.msra.mxu0 0.0
        %1810 = vmatprep.subr.mxu0 0.0
        %1811 = vmatpush1.msra.mxu0 0.0
        %1812 = vmatprep.subr.mxu0 0.0
        %1813 = vmatpush1.msra.mxu0 0.0
        %1814 = vmatprep.subr.mxu0 0.0
        %1815 = vmatpush1.msra.mxu0 0.0
        %1816 = vmatprep.subr.mxu0 0.0
        %1817 = vmatpush1.msra.mxu0 0.0
        %1818 = vmatprep.subr.mxu0 0.0
        %1819 = vmatpush1.msra.mxu0 0.0
        %1820 = vmatprep.subr.mxu0 0.0
        %1821 = vmatpush1.msra.mxu0 0.0
        %1822 = vmatprep.subr.mxu0 0.0
        %1823 = vmatpush1.msra.mxu0 0.0
        %1824 = vmatprep.subr.mxu0 0.0
        %1825 = vmatpush1.msra.mxu0 0.0
        %1826 = vmatprep.subr.mxu0 0.0
        %1827 = vmatpush1.msra.mxu0 0.0
        %1828 = vmatprep.subr.mxu0 0.0
        %1829 = vmatpush1.msra.mxu0 0.0
        %1830 = vmatprep.subr.mxu0 0.0
        %1831 = vmatpush1.msra.mxu0 0.0
        %1832 = vmatprep.subr.mxu0 0.0
        %1833 = vmatpush1.msra.mxu0 0.0
        %1834 = vmatprep.mubr.f32.mxu0 0.0
        %v1835 = vand.u32 %v1756, 4294901760
        %v1836 = vsub.f32 %v1756, %v1835
        %v1837 = vand.u32 %v1836, 4294901760
        %v1838 = vsub.f32 %v1836, %v1837
        %v1839 = vand.u32 %v1838, 4294901760
        %1840 = vmatmul.mubr.f32.gmra.mrb[0].mxu0 %v1839
        %v1841 = vpop.f32.mrb[0].mxu0
        %v1842 = vadd.f32 %v1753, %v1841
        %v1843 = vpop.f32.mrb[0].mxu0
        %v1844 = vadd.f32 %v1753, %v1843
        %1845 = vdwg.mxu0
        %v1846 = vand.u32 %v1741, 4294901760
        %v1847 = vsub.f32 %v1741, %v1846
        %v1848 = vand.u32 %v1847, 4294901760
        %v1849 = vsub.f32 %v1847, %v1848
        %v1850 = vand.u32 %v1849, 4294901760
        %1851 = vmatprep.subr.mxu0 %v1850
        %v1852 = vand.u32 %v1740, 4294901760
        %v1853 = vsub.f32 %v1740, %v1852
        %v1854 = vand.u32 %v1853, 4294901760
        %v1855 = vsub.f32 %v1853, %v1854
        %v1856 = vand.u32 %v1855, 4294901760
        %1857 = vmatpush1.msra.mxu0 %v1856
        %v1858 = vand.u32 %v1747, 4294901760
        %v1859 = vsub.f32 %v1747, %v1858
        %v1860 = vand.u32 %v1859, 4294901760
        %v1861 = vsub.f32 %v1859, %v1860
        %v1862 = vand.u32 %v1861, 4294901760
        %1863 = vmatprep.subr.mxu0 %v1862
        %v1864 = vand.u32 %v1746, 4294901760
        %v1865 = vsub.f32 %v1746, %v1864
        %v1866 = vand.u32 %v1865, 4294901760
        %v1867 = vsub.f32 %v1865, %v1866
        %v1868 = vand.u32 %v1867, 4294901760
        %1869 = vmatpush1.msra.mxu0 %v1868
        %v1870 = vand.u32 %v1762, 4294901760
        %v1871 = vsub.f32 %v1762, %v1870
        %v1872 = vand.u32 %v1871, 4294901760
        %v1873 = vsub.f32 %v1871, %v1872
        %v1874 = vand.u32 %v1873, 4294901760
        %1875 = vmatprep.subr.mxu0 %v1874
        %v1876 = vand.u32 %v1759, 4294901760
        %v1877 = vsub.f32 %v1759, %v1876
        %v1878 = vand.u32 %v1877, 4294901760
        %v1879 = vsub.f32 %v1877, %v1878
        %v1880 = vand.u32 %v1879, 4294901760
        %1881 = vmatpush1.msra.mxu0 %v1880
        %1882 = vmatprep.subr.mxu0 0.0
        %1883 = vmatpush1.msra.mxu0 0.0
        %1884 = vmatprep.subr.mxu0 0.0
        %1885 = vmatpush1.msra.mxu0 0.0
        %1886 = vmatprep.subr.mxu0 0.0
        %1887 = vmatpush1.msra.mxu0 0.0
        %1888 = vmatprep.subr.mxu0 0.0
        %1889 = vmatpush1.msra.mxu0 0.0
        %1890 = vmatprep.subr.mxu0 0.0
        %1891 = vmatpush1.msra.mxu0 0.0
        %1892 = vmatprep.subr.mxu0 0.0
        %1893 = vmatpush1.msra.mxu0 0.0
        %1894 = vmatprep.subr.mxu0 0.0
        %1895 = vmatpush1.msra.mxu0 0.0
        %1896 = vmatprep.subr.mxu0 0.0
        %1897 = vmatpush1.msra.mxu0 0.0
        %1898 = vmatprep.subr.mxu0 0.0
        %1899 = vmatpush1.msra.mxu0 0.0
        %1900 = vmatprep.subr.mxu0 0.0
        %1901 = vmatpush1.msra.mxu0 0.0
        %1902 = vmatprep.subr.mxu0 0.0
        %1903 = vmatpush1.msra.mxu0 0.0
        %1904 = vmatprep.subr.mxu0 0.0
        %1905 = vmatpush1.msra.mxu0 0.0
        %1906 = vmatprep.subr.mxu0 0.0
        %1907 = vmatpush1.msra.mxu0 0.0
        %1908 = vmatprep.subr.mxu0 0.0
        %1909 = vmatpush1.msra.mxu0 0.0
        %1910 = vmatprep.subr.mxu0 0.0
        %1911 = vmatpush1.msra.mxu0 0.0
        %1912 = vmatprep.subr.mxu0 0.0
        %1913 = vmatpush1.msra.mxu0 0.0
        %1914 = vmatprep.subr.mxu0 0.0
        %1915 = vmatpush1.msra.mxu0 0.0
        %1916 = vmatprep.subr.mxu0 0.0
        %1917 = vmatpush1.msra.mxu0 0.0
        %1918 = vmatprep.subr.mxu0 0.0
        %1919 = vmatpush1.msra.mxu0 0.0
        %1920 = vmatprep.subr.mxu0 0.0
        %1921 = vmatpush1.msra.mxu0 0.0
        %1922 = vmatprep.subr.mxu0 0.0
        %1923 = vmatpush1.msra.mxu0 0.0
        %1924 = vmatprep.subr.mxu0 0.0
        %1925 = vmatpush1.msra.mxu0 0.0
        %1926 = vmatprep.subr.mxu0 0.0
        %1927 = vmatpush1.msra.mxu0 0.0
        %1928 = vmatprep.subr.mxu0 0.0
        %1929 = vmatpush1.msra.mxu0 0.0
        %1930 = vmatprep.subr.mxu0 0.0
        %1931 = vmatpush1.msra.mxu0 0.0
        %1932 = vmatprep.subr.mxu0 0.0
        %1933 = vmatpush1.msra.mxu0 0.0
        %1934 = vmatprep.subr.mxu0 0.0
        %1935 = vmatpush1.msra.mxu0 0.0
        %1936 = vmatprep.subr.mxu0 0.0
        %1937 = vmatpush1.msra.mxu0 0.0
        %1938 = vmatprep.subr.mxu0 0.0
        %1939 = vmatpush1.msra.mxu0 0.0
        %1940 = vmatprep.mubr.f32.mxu0 0.0
        %v1941 = vand.u32 %v1756, 4294901760
        %1942 = vmatmul.mubr.f32.gmra.mrb[0].mxu0 %v1941
        %v1943 = vpop.f32.mrb[0].mxu0
        %v1944 = vadd.f32 %v1842, %v1943
        %v1945 = vpop.f32.mrb[0].mxu0
        %v1946 = vadd.f32 %v1844, %v1945
        %1947 = vdwg.mxu0
        %v1948 = vand.u32 %v1741, 4294901760
        %v1949 = vsub.f32 %v1741, %v1948
        %1950 = vmatprep.subr.mxu0 %v1949
        %v1951 = vand.u32 %v1740, 4294901760
        %v1952 = vsub.f32 %v1740, %v1951
        %1953 = vmatpush1.msra.mxu0 %v1952
        %v1954 = vand.u32 %v1747, 4294901760
        %v1955 = vsub.f32 %v1747, %v1954
        %1956 = vmatprep.subr.mxu0 %v1955
        %v1957 = vand.u32 %v1746, 4294901760
        %v1958 = vsub.f32 %v1746, %v1957
        %1959 = vmatpush1.msra.mxu0 %v1958
        %v1960 = vand.u32 %v1762, 4294901760
        %v1961 = vsub.f32 %v1762, %v1960
        %1962 = vmatprep.subr.mxu0 %v1961
        %v1963 = vand.u32 %v1759, 4294901760
        %v1964 = vsub.f32 %v1759, %v1963
        %1965 = vmatpush1.msra.mxu0 %v1964
        %1966 = vmatprep.subr.mxu0 0.0
        %1967 = vmatpush1.msra.mxu0 0.0
        %1968 = vmatprep.subr.mxu0 0.0
        %1969 = vmatpush1.msra.mxu0 0.0
        %1970 = vmatprep.subr.mxu0 0.0
        %1971 = vmatpush1.msra.mxu0 0.0
        %1972 = vmatprep.subr.mxu0 0.0
        %1973 = vmatpush1.msra.mxu0 0.0
        %1974 = vmatprep.subr.mxu0 0.0
        %1975 = vmatpush1.msra.mxu0 0.0
        %1976 = vmatprep.subr.mxu0 0.0
        %1977 = vmatpush1.msra.mxu0 0.0
        %1978 = vmatprep.subr.mxu0 0.0
        %1979 = vmatpush1.msra.mxu0 0.0
        %1980 = vmatprep.subr.mxu0 0.0
        %1981 = vmatpush1.msra.mxu0 0.0
        %1982 = vmatprep.subr.mxu0 0.0
        %1983 = vmatpush1.msra.mxu0 0.0
        %1984 = vmatprep.subr.mxu0 0.0
        %1985 = vmatpush1.msra.mxu0 0.0
        %1986 = vmatprep.subr.mxu0 0.0
        %1987 = vmatpush1.msra.mxu0 0.0
        %1988 = vmatprep.subr.mxu0 0.0
        %1989 = vmatpush1.msra.mxu0 0.0
        %1990 = vmatprep.subr.mxu0 0.0
        %1991 = vmatpush1.msra.mxu0 0.0
        %1992 = vmatprep.subr.mxu0 0.0
        %1993 = vmatpush1.msra.mxu0 0.0
        %1994 = vmatprep.subr.mxu0 0.0
        %1995 = vmatpush1.msra.mxu0 0.0
        %1996 = vmatprep.subr.mxu0 0.0
        %1997 = vmatpush1.msra.mxu0 0.0
        %1998 = vmatprep.subr.mxu0 0.0
        %1999 = vmatpush1.msra.mxu0 0.0
        %2000 = vmatprep.subr.mxu0 0.0
        %2001 = vmatpush1.msra.mxu0 0.0
        %2002 = vmatprep.subr.mxu0 0.0
        %2003 = vmatpush1.msra.mxu0 0.0
        %2004 = vmatprep.subr.mxu0 0.0
        %2005 = vmatpush1.msra.mxu0 0.0
        %2006 = vmatprep.subr.mxu0 0.0
        %2007 = vmatpush1.msra.mxu0 0.0
        %2008 = vmatprep.subr.mxu0 0.0
        %2009 = vmatpush1.msra.mxu0 0.0
        %2010 = vmatprep.subr.mxu0 0.0
        %2011 = vmatpush1.msra.mxu0 0.0
        %2012 = vmatprep.subr.mxu0 0.0
        %2013 = vmatpush1.msra.mxu0 0.0
        %2014 = vmatprep.subr.mxu0 0.0
        %2015 = vmatpush1.msra.mxu0 0.0
        %2016 = vmatprep.subr.mxu0 0.0
        %2017 = vmatpush1.msra.mxu0 0.0
        %2018 = vmatprep.subr.mxu0 0.0
        %2019 = vmatpush1.msra.mxu0 0.0
        %2020 = vmatprep.subr.mxu0 0.0
        %2021 = vmatpush1.msra.mxu0 0.0
        %2022 = vmatprep.subr.mxu0 0.0
        %2023 = vmatpush1.msra.mxu0 0.0
        %2024 = vmatprep.mubr.f32.mxu0 0.0
        %v2025 = vand.u32 %v1756, 4294901760
        %v2026 = vsub.f32 %v1756, %v2025
        %2027 = vmatmul.mubr.f32.gmra.mrb[0].mxu0 %v2026
        %v2028 = vpop.f32.mrb[0].mxu0
        %v2029 = vadd.f32 %v1944, %v2028
        %v2030 = vpop.f32.mrb[0].mxu0
        %v2031 = vadd.f32 %v1946, %v2030
        %2032 = vdwg.mxu0
        %v2033 = vand.u32 %v1741, 4294901760
        %2034 = vmatprep.subr.mxu0 %v2033
        %v2035 = vand.u32 %v1740, 4294901760
        %2036 = vmatpush1.msra.mxu0 %v2035
        %v2037 = vand.u32 %v1747, 4294901760
        %2038 = vmatprep.subr.mxu0 %v2037
        %v2039 = vand.u32 %v1746, 4294901760
        %2040 = vmatpush1.msra.mxu0 %v2039
        %v2041 = vand.u32 %v1762, 4294901760
        %2042 = vmatprep.subr.mxu0 %v2041
        %v2043 = vand.u32 %v1759, 4294901760
        %2044 = vmatpush1.msra.mxu0 %v2043
        %2045 = vmatprep.subr.mxu0 0.0
        %2046 = vmatpush1.msra.mxu0 0.0
        %2047 = vmatprep.subr.mxu0 0.0
        %2048 = vmatpush1.msra.mxu0 0.0
        %2049 = vmatprep.subr.mxu0 0.0
        %2050 = vmatpush1.msra.mxu0 0.0
        %2051 = vmatprep.subr.mxu0 0.0
        %2052 = vmatpush1.msra.mxu0 0.0
        %2053 = vmatprep.subr.mxu0 0.0
        %2054 = vmatpush1.msra.mxu0 0.0
        %2055 = vmatprep.subr.mxu0 0.0
        %2056 = vmatpush1.msra.mxu0 0.0
        %2057 = vmatprep.subr.mxu0 0.0
        %2058 = vmatpush1.msra.mxu0 0.0
        %2059 = vmatprep.subr.mxu0 0.0
        %2060 = vmatpush1.msra.mxu0 0.0
        %2061 = vmatprep.subr.mxu0 0.0
        %2062 = vmatpush1.msra.mxu0 0.0
        %2063 = vmatprep.subr.mxu0 0.0
        %2064 = vmatpush1.msra.mxu0 0.0
        %2065 = vmatprep.subr.mxu0 0.0
        %2066 = vmatpush1.msra.mxu0 0.0
        %2067 = vmatprep.subr.mxu0 0.0
        %2068 = vmatpush1.msra.mxu0 0.0
        %2069 = vmatprep.subr.mxu0 0.0
        %2070 = vmatpush1.msra.mxu0 0.0
        %2071 = vmatprep.subr.mxu0 0.0
        %2072 = vmatpush1.msra.mxu0 0.0
        %2073 = vmatprep.subr.mxu0 0.0
        %2074 = vmatpush1.msra.mxu0 0.0
        %2075 = vmatprep.subr.mxu0 0.0
        %2076 = vmatpush1.msra.mxu0 0.0
        %2077 = vmatprep.subr.mxu0 0.0
        %2078 = vmatpush1.msra.mxu0 0.0
        %2079 = vmatprep.subr.mxu0 0.0
        %2080 = vmatpush1.msra.mxu0 0.0
        %2081 = vmatprep.subr.mxu0 0.0
        %2082 = vmatpush1.msra.mxu0 0.0
        %2083 = vmatprep.subr.mxu0 0.0
        %2084 = vmatpush1.msra.mxu0 0.0
        %2085 = vmatprep.subr.mxu0 0.0
        %2086 = vmatpush1.msra.mxu0 0.0
        %2087 = vmatprep.subr.mxu0 0.0
        %2088 = vmatpush1.msra.mxu0 0.0
        %2089 = vmatprep.subr.mxu0 0.0
        %2090 = vmatpush1.msra.mxu0 0.0
        %2091 = vmatprep.subr.mxu0 0.0
        %2092 = vmatpush1.msra.mxu0 0.0
        %2093 = vmatprep.subr.mxu0 0.0
        %2094 = vmatpush1.msra.mxu0 0.0
        %2095 = vmatprep.subr.mxu0 0.0
        %2096 = vmatpush1.msra.mxu0 0.0
        %2097 = vmatprep.subr.mxu0 0.0
        %2098 = vmatpush1.msra.mxu0 0.0
        %2099 = vmatprep.subr.mxu0 0.0
        %2100 = vmatpush1.msra.mxu0 0.0
        %2101 = vmatprep.subr.mxu0 0.0
        %2102 = vmatpush1.msra.mxu0 0.0
        %2103 = vmatprep.mubr.f32.mxu0 0.0
        %v2104 = vand.u32 %v1756, 4294901760
        %v2105 = vsub.f32 %v1756, %v2104
        %v2106 = vand.u32 %v2105, 4294901760
        %2107 = vmatmul.mubr.f32.gmra.mrb[0].mxu0 %v2106
        %v2108 = vpop.f32.mrb[0].mxu0
        %v2109 = vadd.f32 %v2029, %v2108
        %v2110 = vpop.f32.mrb[0].mxu0
        %v2111 = vadd.f32 %v2031, %v2110
        %2112 = vdwg.mxu0
        %v2113 = vand.u32 %v1741, 4294901760
        %v2114 = vsub.f32 %v1741, %v2113
        %v2115 = vand.u32 %v2114, 4294901760
        %2116 = vmatprep.subr.mxu0 %v2115
        %v2117 = vand.u32 %v1740, 4294901760
        %v2118 = vsub.f32 %v1740, %v2117
        %v2119 = vand.u32 %v2118, 4294901760
        %2120 = vmatpush1.msra.mxu0 %v2119
        %v2121 = vand.u32 %v1747, 4294901760
        %v2122 = vsub.f32 %v1747, %v2121
        %v2123 = vand.u32 %v2122, 4294901760
        %2124 = vmatprep.subr.mxu0 %v2123
        %v2125 = vand.u32 %v1746, 4294901760
        %v2126 = vsub.f32 %v1746, %v2125
        %v2127 = vand.u32 %v2126, 4294901760
        %2128 = vmatpush1.msra.mxu0 %v2127
        %v2129 = vand.u32 %v1762, 4294901760
        %v2130 = vsub.f32 %v1762, %v2129
        %v2131 = vand.u32 %v2130, 4294901760
        %2132 = vmatprep.subr.mxu0 %v2131
        %v2133 = vand.u32 %v1759, 4294901760
        %v2134 = vsub.f32 %v1759, %v2133
        %v2135 = vand.u32 %v2134, 4294901760
        %2136 = vmatpush1.msra.mxu0 %v2135
        %2137 = vmatprep.subr.mxu0 0.0
        %2138 = vmatpush1.msra.mxu0 0.0
        %2139 = vmatprep.subr.mxu0 0.0
        %2140 = vmatpush1.msra.mxu0 0.0
        %2141 = vmatprep.subr.mxu0 0.0
        %2142 = vmatpush1.msra.mxu0 0.0
        %2143 = vmatprep.subr.mxu0 0.0
        %2144 = vmatpush1.msra.mxu0 0.0
        %2145 = vmatprep.subr.mxu0 0.0
        %2146 = vmatpush1.msra.mxu0 0.0
        %2147 = vmatprep.subr.mxu0 0.0
        %2148 = vmatpush1.msra.mxu0 0.0
        %2149 = vmatprep.subr.mxu0 0.0
        %2150 = vmatpush1.msra.mxu0 0.0
        %2151 = vmatprep.subr.mxu0 0.0
        %2152 = vmatpush1.msra.mxu0 0.0
        %2153 = vmatprep.subr.mxu0 0.0
        %2154 = vmatpush1.msra.mxu0 0.0
        %2155 = vmatprep.subr.mxu0 0.0
        %2156 = vmatpush1.msra.mxu0 0.0
        %2157 = vmatprep.subr.mxu0 0.0
        %2158 = vmatpush1.msra.mxu0 0.0
        %2159 = vmatprep.subr.mxu0 0.0
        %2160 = vmatpush1.msra.mxu0 0.0
        %2161 = vmatprep.subr.mxu0 0.0
        %2162 = vmatpush1.msra.mxu0 0.0
        %2163 = vmatprep.subr.mxu0 0.0
        %2164 = vmatpush1.msra.mxu0 0.0
        %2165 = vmatprep.subr.mxu0 0.0
        %2166 = vmatpush1.msra.mxu0 0.0
        %2167 = vmatprep.subr.mxu0 0.0
        %2168 = vmatpush1.msra.mxu0 0.0
        %2169 = vmatprep.subr.mxu0 0.0
        %2170 = vmatpush1.msra.mxu0 0.0
        %2171 = vmatprep.subr.mxu0 0.0
        %2172 = vmatpush1.msra.mxu0 0.0
        %2173 = vmatprep.subr.mxu0 0.0
        %2174 = vmatpush1.msra.mxu0 0.0
        %2175 = vmatprep.subr.mxu0 0.0
        %2176 = vmatpush1.msra.mxu0 0.0
        %2177 = vmatprep.subr.mxu0 0.0
        %2178 = vmatpush1.msra.mxu0 0.0
        %2179 = vmatprep.subr.mxu0 0.0
        %2180 = vmatpush1.msra.mxu0 0.0
        %2181 = vmatprep.subr.mxu0 0.0
        %2182 = vmatpush1.msra.mxu0 0.0
        %2183 = vmatprep.subr.mxu0 0.0
        %2184 = vmatpush1.msra.mxu0 0.0
        %2185 = vmatprep.subr.mxu0 0.0
        %2186 = vmatpush1.msra.mxu0 0.0
        %2187 = vmatprep.subr.mxu0 0.0
        %2188 = vmatpush1.msra.mxu0 0.0
        %2189 = vmatprep.subr.mxu0 0.0
        %2190 = vmatpush1.msra.mxu0 0.0
        %2191 = vmatprep.subr.mxu0 0.0
        %2192 = vmatpush1.msra.mxu0 0.0
        %2193 = vmatprep.subr.mxu0 0.0
        %2194 = vmatpush1.msra.mxu0 0.0
        %2195 = vmatprep.mubr.f32.mxu0 0.0
        %v2196 = vand.u32 %v1756, 4294901760
        %2197 = vmatmul.mubr.f32.gmra.mrb[0].mxu0 %v2196
        %v2198 = vpop.f32.mrb[0].mxu0
        %v2199 = vadd.f32 %v2109, %v2198
        %v2200 = vpop.f32.mrb[0].mxu0
        %v2201 = vadd.f32 %v2111, %v2200
        %2202 = vdwg.mxu0
        %v2203 = vand.u32 %v1741, 4294901760
        %2204 = vmatprep.subr.mxu0 %v2203
        %v2205 = vand.u32 %v1740, 4294901760
        %2206 = vmatpush1.msra.mxu0 %v2205
        %v2207 = vand.u32 %v1747, 4294901760
        %2208 = vmatprep.subr.mxu0 %v2207
        %v2209 = vand.u32 %v1746, 4294901760
        %2210 = vmatpush1.msra.mxu0 %v2209
        %v2211 = vand.u32 %v1762, 4294901760
        %2212 = vmatprep.subr.mxu0 %v2211
        %v2213 = vand.u32 %v1759, 4294901760
        %2214 = vmatpush1.msra.mxu0 %v2213
        %2215 = vmatprep.subr.mxu0 0.0
        %2216 = vmatpush1.msra.mxu0 0.0
        %2217 = vmatprep.subr.mxu0 0.0
        %2218 = vmatpush1.msra.mxu0 0.0
        %2219 = vmatprep.subr.mxu0 0.0
        %2220 = vmatpush1.msra.mxu0 0.0
        %2221 = vmatprep.subr.mxu0 0.0
        %2222 = vmatpush1.msra.mxu0 0.0
        %2223 = vmatprep.subr.mxu0 0.0
        %2224 = vmatpush1.msra.mxu0 0.0
        %2225 = vmatprep.subr.mxu0 0.0
        %2226 = vmatpush1.msra.mxu0 0.0
        %2227 = vmatprep.subr.mxu0 0.0
        %2228 = vmatpush1.msra.mxu0 0.0
        %2229 = vmatprep.subr.mxu0 0.0
        %2230 = vmatpush1.msra.mxu0 0.0
        %2231 = vmatprep.subr.mxu0 0.0
        %2232 = vmatpush1.msra.mxu0 0.0
        %2233 = vmatprep.subr.mxu0 0.0
        %2234 = vmatpush1.msra.mxu0 0.0
        %2235 = vmatprep.subr.mxu0 0.0
        %2236 = vmatpush1.msra.mxu0 0.0
        %2237 = vmatprep.subr.mxu0 0.0
        %2238 = vmatpush1.msra.mxu0 0.0
        %2239 = vmatprep.subr.mxu0 0.0
        %2240 = vmatpush1.msra.mxu0 0.0
        %2241 = vmatprep.subr.mxu0 0.0
        %2242 = vmatpush1.msra.mxu0 0.0
        %2243 = vmatprep.subr.mxu0 0.0
        %2244 = vmatpush1.msra.mxu0 0.0
        %2245 = vmatprep.subr.mxu0 0.0
        %2246 = vmatpush1.msra.mxu0 0.0
        %2247 = vmatprep.subr.mxu0 0.0
        %2248 = vmatpush1.msra.mxu0 0.0
        %2249 = vmatprep.subr.mxu0 0.0
        %2250 = vmatpush1.msra.mxu0 0.0
        %2251 = vmatprep.subr.mxu0 0.0
        %2252 = vmatpush1.msra.mxu0 0.0
        %2253 = vmatprep.subr.mxu0 0.0
        %2254 = vmatpush1.msra.mxu0 0.0
        %2255 = vmatprep.subr.mxu0 0.0
        %2256 = vmatpush1.msra.mxu0 0.0
        %2257 = vmatprep.subr.mxu0 0.0
        %2258 = vmatpush1.msra.mxu0 0.0
        %2259 = vmatprep.subr.mxu0 0.0
        %2260 = vmatpush1.msra.mxu0 0.0
        %2261 = vmatprep.subr.mxu0 0.0
        %2262 = vmatpush1.msra.mxu0 0.0
        %2263 = vmatprep.subr.mxu0 0.0
        %2264 = vmatpush1.msra.mxu0 0.0
        %2265 = vmatprep.subr.mxu0 0.0
        %2266 = vmatpush1.msra.mxu0 0.0
        %2267 = vmatprep.subr.mxu0 0.0
        %2268 = vmatpush1.msra.mxu0 0.0
        %2269 = vmatprep.subr.mxu0 0.0
        %2270 = vmatpush1.msra.mxu0 0.0
        %2271 = vmatprep.subr.mxu0 0.0
        %2272 = vmatpush1.msra.mxu0 0.0
        %2273 = vmatprep.mubr.f32.mxu0 0.0
        %v2274 = vand.u32 %v1756, 4294901760
        %2275 = vmatmul.mubr.f32.gmra.mrb[0].mxu0 %v2274
        %v2276 = vpop.f32.mrb[0].mxu0
        %v2277 = vadd.f32 %v2199, %v2276
        %v2278 = vpop.f32.mrb[0].mxu0
        %v2279 = vadd.f32 %v2201, %v2278
        %2280 = vdwg.mxu0
        %v2281 = vmax.f32 %v2277, 0.0
        %v2282 = vmax.f32 %v2279, 0.0
        %v2283 = vld [vmem:[%s7] sm:$0x1]
        %v2284 = vld [vmem:[#allocation2] sm:$0x1]
        %2286 = vset.pattern.permute.xlu0 0
        %2287 = vperm.xlu0 %2286, %v2284
        %v2288 = vpop.permute.xlu0 %2287
        %v2290 = vlaneseq
        %v2291 = vshrl.u32 %v2290, 7
        %v2292 = vsub.s32 0, %v2291
        %v2293 = vrot.slane %v2288, %v2292
        %vm2294 = vcmask 15360
        %v2296 = vsel %vm2294, %v2283, 0
        %v2299 = vsel %vm1103, %v2281, 0
        %v2302 = vsel %vm1103, %v2282, 0
        %v2304 = vand.u32 %v2302, 4294901760
        %2305 = vmatprep.subr.mxu0 %v2304
        %v2306 = vand.u32 %v2299, 4294901760
        %2307 = vmatpush1.msra.mxu0 %v2306
        %2308 = vmatprep.subr.mxu0 0.0
        %2309 = vmatpush1.msra.mxu0 0.0
        %2310 = vmatprep.subr.mxu0 0.0
        %2311 = vmatpush1.msra.mxu0 0.0
        %2312 = vmatprep.subr.mxu0 0.0
        %2313 = vmatpush1.msra.mxu0 0.0
        %2314 = vmatprep.subr.mxu0 0.0
        %2315 = vmatpush1.msra.mxu0 0.0
        %2316 = vmatprep.subr.mxu0 0.0
        %2317 = vmatpush1.msra.mxu0 0.0
        %2318 = vmatprep.subr.mxu0 0.0
        %2319 = vmatpush1.msra.mxu0 0.0
        %2320 = vmatprep.subr.mxu0 0.0
        %2321 = vmatpush1.msra.mxu0 0.0
        %2322 = vmatprep.subr.mxu0 0.0
        %2323 = vmatpush1.msra.mxu0 0.0
        %2324 = vmatprep.subr.mxu0 0.0
        %2325 = vmatpush1.msra.mxu0 0.0
        %2326 = vmatprep.subr.mxu0 0.0
        %2327 = vmatpush1.msra.mxu0 0.0
        %2328 = vmatprep.subr.mxu0 0.0
        %2329 = vmatpush1.msra.mxu0 0.0
        %2330 = vmatprep.subr.mxu0 0.0
        %2331 = vmatpush1.msra.mxu0 0.0
        %2332 = vmatprep.subr.mxu0 0.0
        %2333 = vmatpush1.msra.mxu0 0.0
        %2334 = vmatprep.subr.mxu0 0.0
        %2335 = vmatpush1.msra.mxu0 0.0
        %2336 = vmatprep.subr.mxu0 0.0
        %2337 = vmatpush1.msra.mxu0 0.0
        %2338 = vmatprep.subr.mxu0 0.0
        %2339 = vmatpush1.msra.mxu0 0.0
        %2340 = vmatprep.subr.mxu0 0.0
        %2341 = vmatpush1.msra.mxu0 0.0
        %2342 = vmatprep.subr.mxu0 0.0
        %2343 = vmatpush1.msra.mxu0 0.0
        %2344 = vmatprep.subr.mxu0 0.0
        %2345 = vmatpush1.msra.mxu0 0.0
        %2346 = vmatprep.subr.mxu0 0.0
        %2347 = vmatpush1.msra.mxu0 0.0
        %2348 = vmatprep.subr.mxu0 0.0
        %2349 = vmatpush1.msra.mxu0 0.0
        %2350 = vmatprep.subr.mxu0 0.0
        %2351 = vmatpush1.msra.mxu0 0.0
        %2352 = vmatprep.subr.mxu0 0.0
        %2353 = vmatpush1.msra.mxu0 0.0
        %2354 = vmatprep.subr.mxu0 0.0
        %2355 = vmatpush1.msra.mxu0 0.0
        %2356 = vmatprep.subr.mxu0 0.0
        %2357 = vmatpush1.msra.mxu0 0.0
        %2358 = vmatprep.subr.mxu0 0.0
        %2359 = vmatpush1.msra.mxu0 0.0
        %2360 = vmatprep.subr.mxu0 0.0
        %2361 = vmatpush1.msra.mxu0 0.0
        %2362 = vmatprep.subr.mxu0 0.0
        %2363 = vmatpush1.msra.mxu0 0.0
        %2364 = vmatprep.subr.mxu0 0.0
        %2365 = vmatpush1.msra.mxu0 0.0
        %2366 = vmatprep.subr.mxu0 0.0
        %2367 = vmatpush1.msra.mxu0 0.0
        %2368 = vmatprep.subr.mxu0 0.0
        %2369 = vmatpush1.msra.mxu0 0.0
        %2370 = vmatprep.mubr.f32.mxu0 0.0
        %v2371 = vand.u32 %v2296, 4294901760
        %v2372 = vsub.f32 %v2296, %v2371
        %v2373 = vand.u32 %v2372, 4294901760
        %v2374 = vsub.f32 %v2372, %v2373
        %v2375 = vand.u32 %v2374, 4294901760
        %2376 = vmatmul.mubr.f32.gmra.mrb[0].mxu0 %v2375
        %v2377 = vpop.f32.mrb[0].mxu0
        %v2378 = vadd.f32 %v2293, %v2377
        %v2379 = vpop.f32.mrb[0].mxu0
        %v2380 = vadd.f32 %v2293, %v2379
        %2381 = vdwg.mxu0
        %v2382 = vand.u32 %v2302, 4294901760
        %v2383 = vsub.f32 %v2302, %v2382
        %v2384 = vand.u32 %v2383, 4294901760
        %v2385 = vsub.f32 %v2383, %v2384
        %v2386 = vand.u32 %v2385, 4294901760
        %2387 = vmatprep.subr.mxu0 %v2386
        %v2388 = vand.u32 %v2299, 4294901760
        %v2389 = vsub.f32 %v2299, %v2388
        %v2390 = vand.u32 %v2389, 4294901760
        %v2391 = vsub.f32 %v2389, %v2390
        %v2392 = vand.u32 %v2391, 4294901760
        %2393 = vmatpush1.msra.mxu0 %v2392
        %2394 = vmatprep.subr.mxu0 0.0
        %2395 = vmatpush1.msra.mxu0 0.0
        %2396 = vmatprep.subr.mxu0 0.0
        %2397 = vmatpush1.msra.mxu0 0.0
        %2398 = vmatprep.subr.mxu0 0.0
        %2399 = vmatpush1.msra.mxu0 0.0
        %2400 = vmatprep.subr.mxu0 0.0
        %2401 = vmatpush1.msra.mxu0 0.0
        %2402 = vmatprep.subr.mxu0 0.0
        %2403 = vmatpush1.msra.mxu0 0.0
        %2404 = vmatprep.subr.mxu0 0.0
        %2405 = vmatpush1.msra.mxu0 0.0
        %2406 = vmatprep.subr.mxu0 0.0
        %2407 = vmatpush1.msra.mxu0 0.0
        %2408 = vmatprep.subr.mxu0 0.0
        %2409 = vmatpush1.msra.mxu0 0.0
        %2410 = vmatprep.subr.mxu0 0.0
        %2411 = vmatpush1.msra.mxu0 0.0
        %2412 = vmatprep.subr.mxu0 0.0
        %2413 = vmatpush1.msra.mxu0 0.0
        %2414 = vmatprep.subr.mxu0 0.0
        %2415 = vmatpush1.msra.mxu0 0.0
        %2416 = vmatprep.subr.mxu0 0.0
        %2417 = vmatpush1.msra.mxu0 0.0
        %2418 = vmatprep.subr.mxu0 0.0
        %2419 = vmatpush1.msra.mxu0 0.0
        %2420 = vmatprep.subr.mxu0 0.0
        %2421 = vmatpush1.msra.mxu0 0.0
        %2422 = vmatprep.subr.mxu0 0.0
        %2423 = vmatpush1.msra.mxu0 0.0
        %2424 = vmatprep.subr.mxu0 0.0
        %2425 = vmatpush1.msra.mxu0 0.0
        %2426 = vmatprep.subr.mxu0 0.0
        %2427 = vmatpush1.msra.mxu0 0.0
        %2428 = vmatprep.subr.mxu0 0.0
        %2429 = vmatpush1.msra.mxu0 0.0
        %2430 = vmatprep.subr.mxu0 0.0
        %2431 = vmatpush1.msra.mxu0 0.0
        %2432 = vmatprep.subr.mxu0 0.0
        %2433 = vmatpush1.msra.mxu0 0.0
        %2434 = vmatprep.subr.mxu0 0.0
        %2435 = vmatpush1.msra.mxu0 0.0
        %2436 = vmatprep.subr.mxu0 0.0
        %2437 = vmatpush1.msra.mxu0 0.0
        %2438 = vmatprep.subr.mxu0 0.0
        %2439 = vmatpush1.msra.mxu0 0.0
        %2440 = vmatprep.subr.mxu0 0.0
        %2441 = vmatpush1.msra.mxu0 0.0
        %2442 = vmatprep.subr.mxu0 0.0
        %2443 = vmatpush1.msra.mxu0 0.0
        %2444 = vmatprep.subr.mxu0 0.0
        %2445 = vmatpush1.msra.mxu0 0.0
        %2446 = vmatprep.subr.mxu0 0.0
        %2447 = vmatpush1.msra.mxu0 0.0
        %2448 = vmatprep.subr.mxu0 0.0
        %2449 = vmatpush1.msra.mxu0 0.0
        %2450 = vmatprep.subr.mxu0 0.0
        %2451 = vmatpush1.msra.mxu0 0.0
        %2452 = vmatprep.subr.mxu0 0.0
        %2453 = vmatpush1.msra.mxu0 0.0
        %2454 = vmatprep.subr.mxu0 0.0
        %2455 = vmatpush1.msra.mxu0 0.0
        %2456 = vmatprep.mubr.f32.mxu0 0.0
        %v2457 = vand.u32 %v2296, 4294901760
        %2458 = vmatmul.mubr.f32.gmra.mrb[0].mxu0 %v2457
        %v2459 = vpop.f32.mrb[0].mxu0
        %v2460 = vadd.f32 %v2378, %v2459
        %v2461 = vpop.f32.mrb[0].mxu0
        %v2462 = vadd.f32 %v2380, %v2461
        %2463 = vdwg.mxu0
        %v2464 = vand.u32 %v2302, 4294901760
        %v2465 = vsub.f32 %v2302, %v2464
        %2466 = vmatprep.subr.mxu0 %v2465
        %v2467 = vand.u32 %v2299, 4294901760
        %v2468 = vsub.f32 %v2299, %v2467
        %2469 = vmatpush1.msra.mxu0 %v2468
        %2470 = vmatprep.subr.mxu0 0.0
        %2471 = vmatpush1.msra.mxu0 0.0
        %2472 = vmatprep.subr.mxu0 0.0
        %2473 = vmatpush1.msra.mxu0 0.0
        %2474 = vmatprep.subr.mxu0 0.0
        %2475 = vmatpush1.msra.mxu0 0.0
        %2476 = vmatprep.subr.mxu0 0.0
        %2477 = vmatpush1.msra.mxu0 0.0
        %2478 = vmatprep.subr.mxu0 0.0
        %2479 = vmatpush1.msra.mxu0 0.0
        %2480 = vmatprep.subr.mxu0 0.0
        %2481 = vmatpush1.msra.mxu0 0.0
        %2482 = vmatprep.subr.mxu0 0.0
        %2483 = vmatpush1.msra.mxu0 0.0
        %2484 = vmatprep.subr.mxu0 0.0
        %2485 = vmatpush1.msra.mxu0 0.0
        %2486 = vmatprep.subr.mxu0 0.0
        %2487 = vmatpush1.msra.mxu0 0.0
        %2488 = vmatprep.subr.mxu0 0.0
        %2489 = vmatpush1.msra.mxu0 0.0
        %2490 = vmatprep.subr.mxu0 0.0
        %2491 = vmatpush1.msra.mxu0 0.0
        %2492 = vmatprep.subr.mxu0 0.0
        %2493 = vmatpush1.msra.mxu0 0.0
        %2494 = vmatprep.subr.mxu0 0.0
        %2495 = vmatpush1.msra.mxu0 0.0
        %2496 = vmatprep.subr.mxu0 0.0
        %2497 = vmatpush1.msra.mxu0 0.0
        %2498 = vmatprep.subr.mxu0 0.0
        %2499 = vmatpush1.msra.mxu0 0.0
        %2500 = vmatprep.subr.mxu0 0.0
        %2501 = vmatpush1.msra.mxu0 0.0
        %2502 = vmatprep.subr.mxu0 0.0
        %2503 = vmatpush1.msra.mxu0 0.0
        %2504 = vmatprep.subr.mxu0 0.0
        %2505 = vmatpush1.msra.mxu0 0.0
        %2506 = vmatprep.subr.mxu0 0.0
        %2507 = vmatpush1.msra.mxu0 0.0
        %2508 = vmatprep.subr.mxu0 0.0
        %2509 = vmatpush1.msra.mxu0 0.0
        %2510 = vmatprep.subr.mxu0 0.0
        %2511 = vmatpush1.msra.mxu0 0.0
        %2512 = vmatprep.subr.mxu0 0.0
        %2513 = vmatpush1.msra.mxu0 0.0
        %2514 = vmatprep.subr.mxu0 0.0
        %2515 = vmatpush1.msra.mxu0 0.0
        %2516 = vmatprep.subr.mxu0 0.0
        %2517 = vmatpush1.msra.mxu0 0.0
        %2518 = vmatprep.subr.mxu0 0.0
        %2519 = vmatpush1.msra.mxu0 0.0
        %2520 = vmatprep.subr.mxu0 0.0
        %2521 = vmatpush1.msra.mxu0 0.0
        %2522 = vmatprep.subr.mxu0 0.0
        %2523 = vmatpush1.msra.mxu0 0.0
        %2524 = vmatprep.subr.mxu0 0.0
        %2525 = vmatpush1.msra.mxu0 0.0
        %2526 = vmatprep.subr.mxu0 0.0
        %2527 = vmatpush1.msra.mxu0 0.0
        %2528 = vmatprep.subr.mxu0 0.0
        %2529 = vmatpush1.msra.mxu0 0.0
        %2530 = vmatprep.subr.mxu0 0.0
        %2531 = vmatpush1.msra.mxu0 0.0
        %2532 = vmatprep.mubr.f32.mxu0 0.0
        %v2533 = vand.u32 %v2296, 4294901760
        %v2534 = vsub.f32 %v2296, %v2533
        %2535 = vmatmul.mubr.f32.gmra.mrb[0].mxu0 %v2534
        %v2536 = vpop.f32.mrb[0].mxu0
        %v2537 = vadd.f32 %v2460, %v2536
        %v2538 = vpop.f32.mrb[0].mxu0
        %v2539 = vadd.f32 %v2462, %v2538
        %2540 = vdwg.mxu0
        %v2541 = vand.u32 %v2302, 4294901760
        %2542 = vmatprep.subr.mxu0 %v2541
        %v2543 = vand.u32 %v2299, 4294901760
        %2544 = vmatpush1.msra.mxu0 %v2543
        %2545 = vmatprep.subr.mxu0 0.0
        %2546 = vmatpush1.msra.mxu0 0.0
        %2547 = vmatprep.subr.mxu0 0.0
        %2548 = vmatpush1.msra.mxu0 0.0
        %2549 = vmatprep.subr.mxu0 0.0
        %2550 = vmatpush1.msra.mxu0 0.0
        %2551 = vmatprep.subr.mxu0 0.0
        %2552 = vmatpush1.msra.mxu0 0.0
        %2553 = vmatprep.subr.mxu0 0.0
        %2554 = vmatpush1.msra.mxu0 0.0
        %2555 = vmatprep.subr.mxu0 0.0
        %2556 = vmatpush1.msra.mxu0 0.0
        %2557 = vmatprep.subr.mxu0 0.0
        %2558 = vmatpush1.msra.mxu0 0.0
        %2559 = vmatprep.subr.mxu0 0.0
        %2560 = vmatpush1.msra.mxu0 0.0
        %2561 = vmatprep.subr.mxu0 0.0
        %2562 = vmatpush1.msra.mxu0 0.0
        %2563 = vmatprep.subr.mxu0 0.0
        %2564 = vmatpush1.msra.mxu0 0.0
        %2565 = vmatprep.subr.mxu0 0.0
        %2566 = vmatpush1.msra.mxu0 0.0
        %2567 = vmatprep.subr.mxu0 0.0
        %2568 = vmatpush1.msra.mxu0 0.0
        %2569 = vmatprep.subr.mxu0 0.0
        %2570 = vmatpush1.msra.mxu0 0.0
        %2571 = vmatprep.subr.mxu0 0.0
        %2572 = vmatpush1.msra.mxu0 0.0
        %2573 = vmatprep.subr.mxu0 0.0
        %2574 = vmatpush1.msra.mxu0 0.0
        %2575 = vmatprep.subr.mxu0 0.0
        %2576 = vmatpush1.msra.mxu0 0.0
        %2577 = vmatprep.subr.mxu0 0.0
        %2578 = vmatpush1.msra.mxu0 0.0
        %2579 = vmatprep.subr.mxu0 0.0
        %2580 = vmatpush1.msra.mxu0 0.0
        %2581 = vmatprep.subr.mxu0 0.0
        %2582 = vmatpush1.msra.mxu0 0.0
        %2583 = vmatprep.subr.mxu0 0.0
        %2584 = vmatpush1.msra.mxu0 0.0
        %2585 = vmatprep.subr.mxu0 0.0
        %2586 = vmatpush1.msra.mxu0 0.0
        %2587 = vmatprep.subr.mxu0 0.0
        %2588 = vmatpush1.msra.mxu0 0.0
        %2589 = vmatprep.subr.mxu0 0.0
        %2590 = vmatpush1.msra.mxu0 0.0
        %2591 = vmatprep.subr.mxu0 0.0
        %2592 = vmatpush1.msra.mxu0 0.0
        %2593 = vmatprep.subr.mxu0 0.0
        %2594 = vmatpush1.msra.mxu0 0.0
        %2595 = vmatprep.subr.mxu0 0.0
        %2596 = vmatpush1.msra.mxu0 0.0
        %2597 = vmatprep.subr.mxu0 0.0
        %2598 = vmatpush1.msra.mxu0 0.0
        %2599 = vmatprep.subr.mxu0 0.0
        %2600 = vmatpush1.msra.mxu0 0.0
        %2601 = vmatprep.subr.mxu0 0.0
        %2602 = vmatpush1.msra.mxu0 0.0
        %2603 = vmatprep.subr.mxu0 0.0
        %2604 = vmatpush1.msra.mxu0 0.0
        %2605 = vmatprep.subr.mxu0 0.0
        %2606 = vmatpush1.msra.mxu0 0.0
        %2607 = vmatprep.mubr.f32.mxu0 0.0
        %v2608 = vand.u32 %v2296, 4294901760
        %v2609 = vsub.f32 %v2296, %v2608
        %v2610 = vand.u32 %v2609, 4294901760
        %2611 = vmatmul.mubr.f32.gmra.mrb[0].mxu0 %v2610
        %v2612 = vpop.f32.mrb[0].mxu0
        %v2613 = vadd.f32 %v2537, %v2612
        %v2614 = vpop.f32.mrb[0].mxu0
        %v2615 = vadd.f32 %v2539, %v2614
        %2616 = vdwg.mxu0
        %v2617 = vand.u32 %v2302, 4294901760
        %v2618 = vsub.f32 %v2302, %v2617
        %v2619 = vand.u32 %v2618, 4294901760
        %2620 = vmatprep.subr.mxu0 %v2619
        %v2621 = vand.u32 %v2299, 4294901760
        %v2622 = vsub.f32 %v2299, %v2621
        %v2623 = vand.u32 %v2622, 4294901760
        %2624 = vmatpush1.msra.mxu0 %v2623
        %2625 = vmatprep.subr.mxu0 0.0
        %2626 = vmatpush1.msra.mxu0 0.0
        %2627 = vmatprep.subr.mxu0 0.0
        %2628 = vmatpush1.msra.mxu0 0.0
        %2629 = vmatprep.subr.mxu0 0.0
        %2630 = vmatpush1.msra.mxu0 0.0
        %2631 = vmatprep.subr.mxu0 0.0
        %2632 = vmatpush1.msra.mxu0 0.0
        %2633 = vmatprep.subr.mxu0 0.0
        %2634 = vmatpush1.msra.mxu0 0.0
        %2635 = vmatprep.subr.mxu0 0.0
        %2636 = vmatpush1.msra.mxu0 0.0
        %2637 = vmatprep.subr.mxu0 0.0
        %2638 = vmatpush1.msra.mxu0 0.0
        %2639 = vmatprep.subr.mxu0 0.0
        %2640 = vmatpush1.msra.mxu0 0.0
        %2641 = vmatprep.subr.mxu0 0.0
        %2642 = vmatpush1.msra.mxu0 0.0
        %2643 = vmatprep.subr.mxu0 0.0
        %2644 = vmatpush1.msra.mxu0 0.0
        %2645 = vmatprep.subr.mxu0 0.0
        %2646 = vmatpush1.msra.mxu0 0.0
        %2647 = vmatprep.subr.mxu0 0.0
        %2648 = vmatpush1.msra.mxu0 0.0
        %2649 = vmatprep.subr.mxu0 0.0
        %2650 = vmatpush1.msra.mxu0 0.0
        %2651 = vmatprep.subr.mxu0 0.0
        %2652 = vmatpush1.msra.mxu0 0.0
        %2653 = vmatprep.subr.mxu0 0.0
        %2654 = vmatpush1.msra.mxu0 0.0
        %2655 = vmatprep.subr.mxu0 0.0
        %2656 = vmatpush1.msra.mxu0 0.0
        %2657 = vmatprep.subr.mxu0 0.0
        %2658 = vmatpush1.msra.mxu0 0.0
        %2659 = vmatprep.subr.mxu0 0.0
        %2660 = vmatpush1.msra.mxu0 0.0
        %2661 = vmatprep.subr.mxu0 0.0
        %2662 = vmatpush1.msra.mxu0 0.0
        %2663 = vmatprep.subr.mxu0 0.0
        %2664 = vmatpush1.msra.mxu0 0.0
        %2665 = vmatprep.subr.mxu0 0.0
        %2666 = vmatpush1.msra.mxu0 0.0
        %2667 = vmatprep.subr.mxu0 0.0
        %2668 = vmatpush1.msra.mxu0 0.0
        %2669 = vmatprep.subr.mxu0 0.0
        %2670 = vmatpush1.msra.mxu0 0.0
        %2671 = vmatprep.subr.mxu0 0.0
        %2672 = vmatpush1.msra.mxu0 0.0
        %2673 = vmatprep.subr.mxu0 0.0
        %2674 = vmatpush1.msra.mxu0 0.0
        %2675 = vmatprep.subr.mxu0 0.0
        %2676 = vmatpush1.msra.mxu0 0.0
        %2677 = vmatprep.subr.mxu0 0.0
        %2678 = vmatpush1.msra.mxu0 0.0
        %2679 = vmatprep.subr.mxu0 0.0
        %2680 = vmatpush1.msra.mxu0 0.0
        %2681 = vmatprep.subr.mxu0 0.0
        %2682 = vmatpush1.msra.mxu0 0.0
        %2683 = vmatprep.subr.mxu0 0.0
        %2684 = vmatpush1.msra.mxu0 0.0
        %2685 = vmatprep.subr.mxu0 0.0
        %2686 = vmatpush1.msra.mxu0 0.0
        %2687 = vmatprep.mubr.f32.mxu0 0.0
        %v2688 = vand.u32 %v2296, 4294901760
        %2689 = vmatmul.mubr.f32.gmra.mrb[0].mxu0 %v2688
        %v2690 = vpop.f32.mrb[0].mxu0
        %v2691 = vadd.f32 %v2613, %v2690
        %v2692 = vpop.f32.mrb[0].mxu0
        %v2693 = vadd.f32 %v2615, %v2692
        %2694 = vdwg.mxu0
        %v2695 = vand.u32 %v2302, 4294901760
        %2696 = vmatprep.subr.mxu0 %v2695
        %v2697 = vand.u32 %v2299, 4294901760
        %2698 = vmatpush1.msra.mxu0 %v2697
        %2699 = vmatprep.subr.mxu0 0.0
        %2700 = vmatpush1.msra.mxu0 0.0
        %2701 = vmatprep.subr.mxu0 0.0
        %2702 = vmatpush1.msra.mxu0 0.0
        %2703 = vmatprep.subr.mxu0 0.0
        %2704 = vmatpush1.msra.mxu0 0.0
        %2705 = vmatprep.subr.mxu0 0.0
        %2706 = vmatpush1.msra.mxu0 0.0
        %2707 = vmatprep.subr.mxu0 0.0
        %2708 = vmatpush1.msra.mxu0 0.0
        %2709 = vmatprep.subr.mxu0 0.0
        %2710 = vmatpush1.msra.mxu0 0.0
        %2711 = vmatprep.subr.mxu0 0.0
        %2712 = vmatpush1.msra.mxu0 0.0
        %2713 = vmatprep.subr.mxu0 0.0
        %2714 = vmatpush1.msra.mxu0 0.0
        %2715 = vmatprep.subr.mxu0 0.0
        %2716 = vmatpush1.msra.mxu0 0.0
        %2717 = vmatprep.subr.mxu0 0.0
        %2718 = vmatpush1.msra.mxu0 0.0
        %2719 = vmatprep.subr.mxu0 0.0
        %2720 = vmatpush1.msra.mxu0 0.0
        %2721 = vmatprep.subr.mxu0 0.0
        %2722 = vmatpush1.msra.mxu0 0.0
        %2723 = vmatprep.subr.mxu0 0.0
        %2724 = vmatpush1.msra.mxu0 0.0
        %2725 = vmatprep.subr.mxu0 0.0
        %2726 = vmatpush1.msra.mxu0 0.0
        %2727 = vmatprep.subr.mxu0 0.0
        %2728 = vmatpush1.msra.mxu0 0.0
        %2729 = vmatprep.subr.mxu0 0.0
        %2730 = vmatpush1.msra.mxu0 0.0
        %2731 = vmatprep.subr.mxu0 0.0
        %2732 = vmatpush1.msra.mxu0 0.0
        %2733 = vmatprep.subr.mxu0 0.0
        %2734 = vmatpush1.msra.mxu0 0.0
        %2735 = vmatprep.subr.mxu0 0.0
        %2736 = vmatpush1.msra.mxu0 0.0
        %2737 = vmatprep.subr.mxu0 0.0
        %2738 = vmatpush1.msra.mxu0 0.0
        %2739 = vmatprep.subr.mxu0 0.0
        %2740 = vmatpush1.msra.mxu0 0.0
        %2741 = vmatprep.subr.mxu0 0.0
        %2742 = vmatpush1.msra.mxu0 0.0
        %2743 = vmatprep.subr.mxu0 0.0
        %2744 = vmatpush1.msra.mxu0 0.0
        %2745 = vmatprep.subr.mxu0 0.0
        %2746 = vmatpush1.msra.mxu0 0.0
        %2747 = vmatprep.subr.mxu0 0.0
        %2748 = vmatpush1.msra.mxu0 0.0
        %2749 = vmatprep.subr.mxu0 0.0
        %2750 = vmatpush1.msra.mxu0 0.0
        %2751 = vmatprep.subr.mxu0 0.0
        %2752 = vmatpush1.msra.mxu0 0.0
        %2753 = vmatprep.subr.mxu0 0.0
        %2754 = vmatpush1.msra.mxu0 0.0
        %2755 = vmatprep.subr.mxu0 0.0
        %2756 = vmatpush1.msra.mxu0 0.0
        %2757 = vmatprep.subr.mxu0 0.0
        %2758 = vmatpush1.msra.mxu0 0.0
        %2759 = vmatprep.subr.mxu0 0.0
        %2760 = vmatpush1.msra.mxu0 0.0
        %2761 = vmatprep.mubr.f32.mxu0 0.0
        %v2762 = vand.u32 %v2296, 4294901760
        %2763 = vmatmul.mubr.f32.gmra.mrb[0].mxu0 %v2762
        %v2764 = vpop.f32.mrb[0].mxu0
        %v2765 = vadd.f32 %v2691, %v2764
        %v2766 = vpop.f32.mrb[0].mxu0
        %v2767 = vadd.f32 %v2693, %v2766
        %2768 = vdwg.mxu0
        %v2771 = vcombine.low %v2765, %v2767
        %v2773 = vunpack.c.l.s4 1966171168
        %v2774 = vunpack.c.0.s8 %v2773
        %v2775 = vlaneseq
        %v2776 = vshrl.u32 %v2775, 7
        %v2777 = vsub.s32 %v2774, %v2776
        %v2778 = vrot.slane %v2771, %v2777
        %v2780 = vunpack.c.l.s4 1966171168
        %v2781 = vunpack.c.0.s8 %v2780
        %v2782 = vlaneseq
        %v2783 = vshrl.u32 %v2782, 7
        %v2784 = vsub.s32 %v2781, %v2783
        %v2785 = vrot.slane %v2778, %v2784
        %v2787 = vlaneseq
        %vm2788 = vcmp.ge.s32.totalorder %v2787, 0
        %vm2789 = vcmp.lt.s32.totalorder %v2787, 256
        %vm2790 = vmand %vm2788, %vm2789
        %2791 = vst.msk [vmem:[%s379] sm:$0x3] %vm2790, %v2785
        %s2792 = sand.u32 %s252, 1
        %s2793 = scalar_lea.sflag [#allocation5], %s2792
        %s2794 = sand.u32 %s252, 1
        %s2795 = smul.addr %s2794, 2
        %s2796 = scalar_lea.vmem [#allocation6], %s2795
        // Predicated region
        $region65: #{tpu_custom_call.1} parent=59 // pred_check
          %p2797 = pneg %p262
        $region66: #{tpu_custom_call.1} parent=59 // pred_check_branch
          %2799 = sbr.rel (%p2797) target = $region68
        $region67: #{tpu_custom_call.1} parent=59 // pred_region
          %s2800 = smul.u32 2, %s29
          %s2802 = ssub.s32 32, 32
          %2803 = vsyncadd %s2793, %s2802
          %s2804 = smul.addr %s2800, 16
          %s2805 = scalar_lea.hbm %s10, %s2804
          %s2807 = sshll.u32 %s2796, 4
          %s2808 = int_to_ptr.vmem [resolvable:$true] %s2807
          %2810 = dma.vmem_to_hbm [thread:$0]  %s2808, 32, %s2805, %s2793
        $region68: #{tpu_custom_call.1} parent=59 // pred_fallthru
          _
      $region60: #{tpu_custom_call.1} parent=5 // pred_fallthru
        _
      %p2811 = scmp.le.s32.totalorder 2, %s24
      // Predicated region
      $region69: #{tpu_custom_call.1} parent=5 // pred_check
        %p2812 = pneg %p2811
      $region70: #{tpu_custom_call.1} parent=5 // pred_check_branch
        %2814 = sbr.rel (%p2812) target = $region72
      $region71: #{tpu_custom_call.1} parent=5 // pred_region
        %s2815 = ssub.s32 %s24, 2
        // Predicated region
        $region73: #{tpu_custom_call.1} parent=71 // pred_check
          %p2816 = pneg %p268
        $region74: #{tpu_custom_call.1} parent=71 // pred_check_branch
          %2818 = sbr.rel (%p2816) target = $region76
        $region75: #{tpu_custom_call.1} parent=71 // pred_region
          %s2819 = sand.u32 %s253, 1
          %s2820 = scalar_lea.sflag [#allocation5], %s2819
          %s2821 = sand.u32 %s253, 1
          %s2822 = smul.addr %s2821, 2
          %s2823 = scalar_lea.vmem [#allocation6], %s2822
          %2824 = dma.done %s2820, 32
        $region76: #{tpu_custom_call.1} parent=71 // pred_fallthru
          _
      $region72: #{tpu_custom_call.1} parent=5 // pred_fallthru
        _
    $region6: #{tpu_custom_call.1} parent=1 // loop_footer
      %s28 = sadd.s32 1, %s24
    $region7: #{tpu_custom_call.1} parent=1 // loop_footer_branch
      %23 = sbr.rel target = $region3
    $region8: #{tpu_custom_call.1} parent=1 // loop_exit
      _
    %2825 = vsyncpa [#allocation4], 1
    %s2826 = scalar_lea.sflag [#allocation4], 1
    %2827 = vsyncpa %s2826, 1
    %2828 = vsyncpa [#allocation5], 1
    %s2829 = scalar_lea.sflag [#allocation5], 1
    %2830 = vsyncpa %s2829, 1

</llo_original>
